<compile_context>
chip_gen: v5e
topology: v5e:2x2
jax: 0.10.0
libtpu: 0.0.40
codegen_flags: <defaults>
</compile_context>

<pallas_src>
import functools

import jax
import jax.numpy as jnp
from jax.experimental import pallas as pl
from jax.experimental.pallas import tpu as pltpu


def _e3d_kernel(x_ref, w_ref, o_ref, xcol_ref, *, sH, sT, p_tile, halo):
    """One (batch, spatial-tile) grid step.

    x_ref   : (Cin, Pext)        bf16  zero-padded volume, flat (T,H,W) lane axis;
                                       resident in VMEM across all p-tiles of a batch.
    w_ref   : (Cout, 27*Cin)     f32   combined 3x3x3 weights, taps (dt,dh,dw) row-major.
    o_ref   : (Cout, P_TILE)     f32   conv + leaky_relu for this tile (lane-dense).
    xcol_ref: (27*Cin, P_TILE)   f32   im2col scratch for this tile.
    """
    cin = x_ref.shape[0]
    base = pl.multiple_of(pl.program_id(1) * p_tile, p_tile)   # 128-aligned tile start

    # One aligned wide load per tile; every tap is then a cheap *static* lane slice.
    xwin = x_ref[:, pl.ds(base, p_tile + halo)].astype(jnp.float32)   # (Cin, P_TILE+halo)

    k = 0
    for dt in range(3):                       # 27 static taps -> im2col rows
        for dh in range(3):
            for dw in range(3):
                off = dt * sT + dh * sH + dw
                xcol_ref[k * cin:(k + 1) * cin, :] = xwin[:, off:off + p_tile]
                k += 1

    # Single MXU contraction over K = 27*Cin (instead of 27 tiny K=Cin matmuls).
    acc = jnp.dot(w_ref[...], xcol_ref[...], preferred_element_type=jnp.float32)
    o_ref[...] = jnp.where(acc > 0, acc, 0.01 * acc).astype(o_ref.dtype)   # leaky_relu


def combine_weights(w1, w2, w3, w4):
    """Sum the four conv kernels into one (Cout, Cin, 3, 3, 3) kernel (exact math)."""
    wc = w1
    wc = wc.at[:, :, 1:2, :, :].add(w2)   # (1,3,3) conv -> centre kT tap
    wc = wc.at[:, :, :, 1:2, :].add(w3)   # (3,1,3) conv -> centre kH tap
    wc = wc.at[:, :, :, :, 1:2].add(w4)   # (3,3,1) conv -> centre kW tap
    return wc


def prepare_weights(w1, w2, w3, w4):
    """One-time weight preprocessing (hoisted out of the per-call forward path)."""
    wc = combine_weights(w1, w2, w3, w4)
    cout, cin = wc.shape[:2]
    # (Cout, 27*Cin), tap-major (dt, dh, dw), kept in f32 (exact weights).
    w_flat = jnp.transpose(wc, (0, 2, 3, 4, 1)).reshape(cout, 27 * cin)
    return w_flat.astype(jnp.float32)


def e3d_forward(x, w_flat, *, p_tile=1024):
    """x: (N, Cin, T, H, W) float32 NCDHW; w_flat: (Cout, 27*Cin) from prepare_weights."""
    N, cin, T, H, W = x.shape
    cout = w_flat.shape[0]
    assert w_flat.shape[1] == 27 * cin

    sH = W + 2                       # flat stride of one padded H row
    sT = (H + 2) * (W + 2)           # flat stride of one padded T plane
    P = T * sT                       # only real output T planes are computed/stored
    halo = 2 * sT + 2 * sH + 2       # max tap offset, (dt,dh,dw) = (2,2,2)

    # Spatial tile: multiple of 128 (unmasked lane-dense stores), capped near P.
    p_tile = max(128, min(p_tile, pl.cdiv(P, 128) * 128))
    n_p = pl.cdiv(P, p_tile)
    P_pad = n_p * p_tile

    # Zero-pad: 1-voxel halo + just enough tail T planes that every tap slice of
    # every tile stays in bounds (channels-first, no transposes; reshape is metadata).
    need = P_pad + halo
    tail_T = max(1, -(-(need - (T + 1) * sT) // sT))
    Pext = (T + 1 + tail_T) * sT
    xpad = jnp.pad(x.astype(jnp.bfloat16),
                   ((0, 0), (0, 0), (1, tail_T), (1, 1), (1, 1)))
    xflat = xpad.reshape(N, cin, Pext)

    kernel = functools.partial(_e3d_kernel, sH=sH, sT=sT, p_tile=p_tile, halo=halo)
    out_flat = pl.pallas_call(
        kernel,
        out_shape=jax.ShapeDtypeStruct((N, cout, P_pad), jnp.float32),
        grid_spec=pltpu.PrefetchScalarGridSpec(
            num_scalar_prefetch=0,
            grid=(N, n_p),
            in_specs=[
                # whole padded volume stays VMEM-resident across p-tiles (index_map ignores p)
                pl.BlockSpec((None, cin, Pext), lambda n, p: (n, 0, 0)),
                pl.BlockSpec((cout, 27 * cin), lambda n, p: (0, 0)),
            ],
            out_specs=pl.BlockSpec((None, cout, p_tile), lambda n, p: (n, 0, p)),
            scratch_shapes=[pltpu.VMEM((27 * cin, p_tile), jnp.float32)],
        ),
        compiler_params=pltpu.CompilerParams(
            dimension_semantics=("parallel", "parallel"),
            vmem_limit_bytes=48 * 1024 * 1024),   # safe on v5e/v6e (128 MiB) and v7x (64 MiB)
    )(xflat, w_flat)

    # Drop pad columns + H/W halo: one contiguous slice, metadata reshape, one slice.
    out = out_flat[:, :, :P].reshape(N, cout, T, H + 2, W + 2)[:, :, :, :H, :W]
    return out
    # TODO(synk): for production GaitStrip sizes on v7x, block the T axis too (halo'd
    # manual DMA of x) so the resident input slab stays well under 64 MiB VMEM.


# ----------------------------- references (pure JAX) -----------------------------

def _leaky(x):
    return jnp.where(x > 0, x, 0.01 * x)


def reference_e3d(x, w1, w2, w3, w4):
    """Matches the PyTorch forward exactly (four convs, summed, leaky_relu)."""
    dn = ("NCDHW", "OIDHW", "NCDHW")
    conv = lambda w, pad: jax.lax.conv_general_dilated(
        x, w, window_strides=(1, 1, 1), padding=[(p, p) for p in pad],
        dimension_numbers=dn, precision=jax.lax.Precision.HIGHEST)
    return _leaky(conv(w1, (1, 1, 1)) + conv(w2, (0, 1, 1)) +
                  conv(w3, (1, 0, 1)) + conv(w4, (1, 1, 0)))


def reference_combined(x, wc):
    """Single 3x3x3 conv with the combined kernel + leaky_relu."""
    dn = ("NCDHW", "OIDHW", "NCDHW")
    out = jax.lax.conv_general_dilated(
        x, wc, window_strides=(1, 1, 1), padding=[(1, 1)] * 3,
        dimension_numbers=dn, precision=jax.lax.Precision.HIGHEST)
    return _leaky(out)


if __name__ == "__main__":
    # Small shapes consistent with the module: NCDHW input, Conv3d weights, bias=False.
    N, Cin, Cout, T, H, W = 2, 4, 8, 4, 8, 8

    key = jax.random.PRNGKey(0)
    kx, k1, k2, k3, k4 = jax.random.split(key, 5)

    x = jax.random.normal(kx, (N, Cin, T, H, W), jnp.float32)
    w1 = 0.1 * jax.random.normal(k1, (Cout, Cin, 3, 3, 3), jnp.float32)
    w2 = 0.1 * jax.random.normal(k2, (Cout, Cin, 1, 3, 3), jnp.float32)
    w3 = 0.1 * jax.random.normal(k3, (Cout, Cin, 3, 1, 3), jnp.float32)
    w4 = 0.1 * jax.random.normal(k4, (Cout, Cin, 3, 3, 1), jnp.float32)

    # (1) Combined-kernel math equals the original four-conv sum (pure f32).
    wc = combine_weights(w1, w2, w3, w4)
    ref4 = reference_e3d(x, w1, w2, w3, w4)
    refc = reference_combined(x, wc)
    assert jnp.allclose(refc, ref4, atol=1e-4, rtol=1e-4), (
        float(jnp.max(jnp.abs(refc - ref4))))

    # (2) Pallas kernel (bf16 activations, f32 weights/accumulation) vs a
    #     precision-matched reference (input rounded to bf16, math in f32).
    w_flat = prepare_weights(w1, w2, w3, w4)   # one-time prep, outside forward path
    out = jax.block_until_ready(e3d_forward(x, w_flat))
    assert out.shape == (N, Cout, T, H, W), out.shape

    x_bf = x.astype(jnp.bfloat16).astype(jnp.float32)
    ref_bf = jax.block_until_ready(reference_combined(x_bf, wc))
    assert jnp.allclose(out, ref_bf, atol=1e-3, rtol=1e-3), (
        float(jnp.max(jnp.abs(out - ref_bf))))

    print("KERNEL_OK")
</pallas_src>

<mosaic_0001>
module attributes {stable_mosaic.version = 11 : i64} {
  func.func @_e3d_kernel(%arg0: i32, %arg1: i32, %arg2: memref<1x4x800xbf16, #tpu.memory_space<vmem>>, %arg3: memref<8x108xf32, #tpu.memory_space<vmem>>, %arg4: memref<1x8x512xf32, #tpu.memory_space<vmem>>, %arg5: memref<108x512xf32, #tpu.memory_space<vmem>>) attributes {dimension_semantics = [#tpu.dimension_semantics<parallel>, #tpu.dimension_semantics<parallel>], iteration_bounds = array<i64: 2, 1>, scalar_prefetch = 0 : i64, scratch_operands = 1 : i64, tpu.core_type = #tpu.core_type<tc>, window_params = [{transform_indices = @transform_0, window_bounds = array<i64: 1, 4, 800>}, {pipeline_mode = #tpu.pipeline_mode<synchronous>, transform_indices = @transform_1, window_bounds = array<i64: 8, 108>}, {transform_indices = @transform_2, window_bounds = array<i64: 1, 8, 512>}]} {
    %c512_i32 = arith.constant 512 : i32
    %0 = arith.muli %arg1, %c512_i32 : i32
    %1 = tpu.assume_multiple %0, 512 : i32
    %c0 = arith.constant 0 : index
    %c0_0 = arith.constant 0 : index
    %2 = arith.index_cast %1 : i32 to index
    %3 = vector.load %arg2[%c0, %c0_0, %2] : memref<1x4x800xbf16, #tpu.memory_space<vmem>>, vector<1x4x734xbf16>
    %4 = vector.shape_cast %3 : vector<1x4x734xbf16> to vector<4x734xbf16>
    %5 = arith.extf %4 : vector<4x734xbf16> to vector<4x734xf32>
    %6 = vector.extract_strided_slice %5 {offsets = [0, 0], sizes = [4, 512], strides = [1, 1]} : vector<4x734xf32> to vector<4x512xf32>
    %c0_1 = arith.constant 0 : index
    %c0_2 = arith.constant 0 : index
    %7 = vector.load %arg5[%c0_1, %c0_2] : memref<108x512xf32, #tpu.memory_space<vmem>>, vector<4x512xf32>
    tpu.vector_store %arg5[%c0_1, %c0_2], %6 {strides = array<i32>} : memref<108x512xf32, #tpu.memory_space<vmem>>, vector<4x512xf32>,
    %8 = vector.extract_strided_slice %5 {offsets = [0, 1], sizes = [4, 512], strides = [1, 1]} : vector<4x734xf32> to vector<4x512xf32>
    %c4 = arith.constant 4 : index
    %c0_3 = arith.constant 0 : index
    %9 = vector.load %arg5[%c4, %c0_3] : memref<108x512xf32, #tpu.memory_space<vmem>>, vector<4x512xf32>
    tpu.vector_store %arg5[%c4, %c0_3], %8 {strides = array<i32>} : memref<108x512xf32, #tpu.memory_space<vmem>>, vector<4x512xf32>,
    %10 = vector.extract_strided_slice %5 {offsets = [0, 2], sizes = [4, 512], strides = [1, 1]} : vector<4x734xf32> to vector<4x512xf32>
    %c8 = arith.constant 8 : index
    %c0_4 = arith.constant 0 : index
    %11 = vector.load %arg5[%c8, %c0_4] : memref<108x512xf32, #tpu.memory_space<vmem>>, vector<4x512xf32>
    tpu.vector_store %arg5[%c8, %c0_4], %10 {strides = array<i32>} : memref<108x512xf32, #tpu.memory_space<vmem>>, vector<4x512xf32>,
    %12 = vector.extract_strided_slice %5 {offsets = [0, 10], sizes = [4, 512], strides = [1, 1]} : vector<4x734xf32> to vector<4x512xf32>
    %c12 = arith.constant 12 : index
    %c0_5 = arith.constant 0 : index
    %13 = vector.load %arg5[%c12, %c0_5] : memref<108x512xf32, #tpu.memory_space<vmem>>, vector<4x512xf32>
    tpu.vector_store %arg5[%c12, %c0_5], %12 {strides = array<i32>} : memref<108x512xf32, #tpu.memory_space<vmem>>, vector<4x512xf32>,
    %14 = vector.extract_strided_slice %5 {offsets = [0, 11], sizes = [4, 512], strides = [1, 1]} : vector<4x734xf32> to vector<4x512xf32>
    %c16 = arith.constant 16 : index
    %c0_6 = arith.constant 0 : index
    %15 = vector.load %arg5[%c16, %c0_6] : memref<108x512xf32, #tpu.memory_space<vmem>>, vector<4x512xf32>
    tpu.vector_store %arg5[%c16, %c0_6], %14 {strides = array<i32>} : memref<108x512xf32, #tpu.memory_space<vmem>>, vector<4x512xf32>,
    %16 = vector.extract_strided_slice %5 {offsets = [0, 12], sizes = [4, 512], strides = [1, 1]} : vector<4x734xf32> to vector<4x512xf32>
    %c20 = arith.constant 20 : index
    %c0_7 = arith.constant 0 : index
    %17 = vector.load %arg5[%c20, %c0_7] : memref<108x512xf32, #tpu.memory_space<vmem>>, vector<4x512xf32>
    tpu.vector_store %arg5[%c20, %c0_7], %16 {strides = array<i32>} : memref<108x512xf32, #tpu.memory_space<vmem>>, vector<4x512xf32>,
    %18 = vector.extract_strided_slice %5 {offsets = [0, 20], sizes = [4, 512], strides = [1, 1]} : vector<4x734xf32> to vector<4x512xf32>
    %c24 = arith.constant 24 : index
    %c0_8 = arith.constant 0 : index
    %19 = vector.load %arg5[%c24, %c0_8] : memref<108x512xf32, #tpu.memory_space<vmem>>, vector<4x512xf32>
    tpu.vector_store %arg5[%c24, %c0_8], %18 {strides = array<i32>} : memref<108x512xf32, #tpu.memory_space<vmem>>, vector<4x512xf32>,
    %20 = vector.extract_strided_slice %5 {offsets = [0, 21], sizes = [4, 512], strides = [1, 1]} : vector<4x734xf32> to vector<4x512xf32>
    %c28 = arith.constant 28 : index
    %c0_9 = arith.constant 0 : index
    %21 = vector.load %arg5[%c28, %c0_9] : memref<108x512xf32, #tpu.memory_space<vmem>>, vector<4x512xf32>
    tpu.vector_store %arg5[%c28, %c0_9], %20 {strides = array<i32>} : memref<108x512xf32, #tpu.memory_space<vmem>>, vector<4x512xf32>,
    %22 = vector.extract_strided_slice %5 {offsets = [0, 22], sizes = [4, 512], strides = [1, 1]} : vector<4x734xf32> to vector<4x512xf32>
    %c32 = arith.constant 32 : index
    %c0_10 = arith.constant 0 : index
    %23 = vector.load %arg5[%c32, %c0_10] : memref<108x512xf32, #tpu.memory_space<vmem>>, vector<4x512xf32>
    tpu.vector_store %arg5[%c32, %c0_10], %22 {strides = array<i32>} : memref<108x512xf32, #tpu.memory_space<vmem>>, vector<4x512xf32>,
    %24 = vector.extract_strided_slice %5 {offsets = [0, 100], sizes = [4, 512], strides = [1, 1]} : vector<4x734xf32> to vector<4x512xf32>
    %c36 = arith.constant 36 : index
    %c0_11 = arith.constant 0 : index
    %25 = vector.load %arg5[%c36, %c0_11] : memref<108x512xf32, #tpu.memory_space<vmem>>, vector<4x512xf32>
    tpu.vector_store %arg5[%c36, %c0_11], %24 {strides = array<i32>} : memref<108x512xf32, #tpu.memory_space<vmem>>, vector<4x512xf32>,
    %26 = vector.extract_strided_slice %5 {offsets = [0, 101], sizes = [4, 512], strides = [1, 1]} : vector<4x734xf32> to vector<4x512xf32>
    %c40 = arith.constant 40 : index
    %c0_12 = arith.constant 0 : index
    %27 = vector.load %arg5[%c40, %c0_12] : memref<108x512xf32, #tpu.memory_space<vmem>>, vector<4x512xf32>
    tpu.vector_store %arg5[%c40, %c0_12], %26 {strides = array<i32>} : memref<108x512xf32, #tpu.memory_space<vmem>>, vector<4x512xf32>,
    %28 = vector.extract_strided_slice %5 {offsets = [0, 102], sizes = [4, 512], strides = [1, 1]} : vector<4x734xf32> to vector<4x512xf32>
    %c44 = arith.constant 44 : index
    %c0_13 = arith.constant 0 : index
    %29 = vector.load %arg5[%c44, %c0_13] : memref<108x512xf32, #tpu.memory_space<vmem>>, vector<4x512xf32>
    tpu.vector_store %arg5[%c44, %c0_13], %28 {strides = array<i32>} : memref<108x512xf32, #tpu.memory_space<vmem>>, vector<4x512xf32>,
    %30 = vector.extract_strided_slice %5 {offsets = [0, 110], sizes = [4, 512], strides = [1, 1]} : vector<4x734xf32> to vector<4x512xf32>
    %c48 = arith.constant 48 : index
    %c0_14 = arith.constant 0 : index
    %31 = vector.load %arg5[%c48, %c0_14] : memref<108x512xf32, #tpu.memory_space<vmem>>, vector<4x512xf32>
    tpu.vector_store %arg5[%c48, %c0_14], %30 {strides = array<i32>} : memref<108x512xf32, #tpu.memory_space<vmem>>, vector<4x512xf32>,
    %32 = vector.extract_strided_slice %5 {offsets = [0, 111], sizes = [4, 512], strides = [1, 1]} : vector<4x734xf32> to vector<4x512xf32>
    %c52 = arith.constant 52 : index
    %c0_15 = arith.constant 0 : index
    %33 = vector.load %arg5[%c52, %c0_15] : memref<108x512xf32, #tpu.memory_space<vmem>>, vector<4x512xf32>
    tpu.vector_store %arg5[%c52, %c0_15], %32 {strides = array<i32>} : memref<108x512xf32, #tpu.memory_space<vmem>>, vector<4x512xf32>,
    %34 = vector.extract_strided_slice %5 {offsets = [0, 112], sizes = [4, 512], strides = [1, 1]} : vector<4x734xf32> to vector<4x512xf32>
    %c56 = arith.constant 56 : index
    %c0_16 = arith.constant 0 : index
    %35 = vector.load %arg5[%c56, %c0_16] : memref<108x512xf32, #tpu.memory_space<vmem>>, vector<4x512xf32>
    tpu.vector_store %arg5[%c56, %c0_16], %34 {strides = array<i32>} : memref<108x512xf32, #tpu.memory_space<vmem>>, vector<4x512xf32>,
    %36 = vector.extract_strided_slice %5 {offsets = [0, 120], sizes = [4, 512], strides = [1, 1]} : vector<4x734xf32> to vector<4x512xf32>
    %c60 = arith.constant 60 : index
    %c0_17 = arith.constant 0 : index
    %37 = vector.load %arg5[%c60, %c0_17] : memref<108x512xf32, #tpu.memory_space<vmem>>, vector<4x512xf32>
    tpu.vector_store %arg5[%c60, %c0_17], %36 {strides = array<i32>} : memref<108x512xf32, #tpu.memory_space<vmem>>, vector<4x512xf32>,
    %38 = vector.extract_strided_slice %5 {offsets = [0, 121], sizes = [4, 512], strides = [1, 1]} : vector<4x734xf32> to vector<4x512xf32>
    %c64 = arith.constant 64 : index
    %c0_18 = arith.constant 0 : index
    %39 = vector.load %arg5[%c64, %c0_18] : memref<108x512xf32, #tpu.memory_space<vmem>>, vector<4x512xf32>
    tpu.vector_store %arg5[%c64, %c0_18], %38 {strides = array<i32>} : memref<108x512xf32, #tpu.memory_space<vmem>>, vector<4x512xf32>,
    %40 = vector.extract_strided_slice %5 {offsets = [0, 122], sizes = [4, 512], strides = [1, 1]} : vector<4x734xf32> to vector<4x512xf32>
    %c68 = arith.constant 68 : index
    %c0_19 = arith.constant 0 : index
    %41 = vector.load %arg5[%c68, %c0_19] : memref<108x512xf32, #tpu.memory_space<vmem>>, vector<4x512xf32>
    tpu.vector_store %arg5[%c68, %c0_19], %40 {strides = array<i32>} : memref<108x512xf32, #tpu.memory_space<vmem>>, vector<4x512xf32>,
    %42 = vector.extract_strided_slice %5 {offsets = [0, 200], sizes = [4, 512], strides = [1, 1]} : vector<4x734xf32> to vector<4x512xf32>
    %c72 = arith.constant 72 : index
    %c0_20 = arith.constant 0 : index
    %43 = vector.load %arg5[%c72, %c0_20] : memref<108x512xf32, #tpu.memory_space<vmem>>, vector<4x512xf32>
    tpu.vector_store %arg5[%c72, %c0_20], %42 {strides = array<i32>} : memref<108x512xf32, #tpu.memory_space<vmem>>, vector<4x512xf32>,
    %44 = vector.extract_strided_slice %5 {offsets = [0, 201], sizes = [4, 512], strides = [1, 1]} : vector<4x734xf32> to vector<4x512xf32>
    %c76 = arith.constant 76 : index
    %c0_21 = arith.constant 0 : index
    %45 = vector.load %arg5[%c76, %c0_21] : memref<108x512xf32, #tpu.memory_space<vmem>>, vector<4x512xf32>
    tpu.vector_store %arg5[%c76, %c0_21], %44 {strides = array<i32>} : memref<108x512xf32, #tpu.memory_space<vmem>>, vector<4x512xf32>,
    %46 = vector.extract_strided_slice %5 {offsets = [0, 202], sizes = [4, 512], strides = [1, 1]} : vector<4x734xf32> to vector<4x512xf32>
    %c80 = arith.constant 80 : index
    %c0_22 = arith.constant 0 : index
    %47 = vector.load %arg5[%c80, %c0_22] : memref<108x512xf32, #tpu.memory_space<vmem>>, vector<4x512xf32>
    tpu.vector_store %arg5[%c80, %c0_22], %46 {strides = array<i32>} : memref<108x512xf32, #tpu.memory_space<vmem>>, vector<4x512xf32>,
    %48 = vector.extract_strided_slice %5 {offsets = [0, 210], sizes = [4, 512], strides = [1, 1]} : vector<4x734xf32> to vector<4x512xf32>
    %c84 = arith.constant 84 : index
    %c0_23 = arith.constant 0 : index
    %49 = vector.load %arg5[%c84, %c0_23] : memref<108x512xf32, #tpu.memory_space<vmem>>, vector<4x512xf32>
    tpu.vector_store %arg5[%c84, %c0_23], %48 {strides = array<i32>} : memref<108x512xf32, #tpu.memory_space<vmem>>, vector<4x512xf32>,
    %50 = vector.extract_strided_slice %5 {offsets = [0, 211], sizes = [4, 512], strides = [1, 1]} : vector<4x734xf32> to vector<4x512xf32>
    %c88 = arith.constant 88 : index
    %c0_24 = arith.constant 0 : index
    %51 = vector.load %arg5[%c88, %c0_24] : memref<108x512xf32, #tpu.memory_space<vmem>>, vector<4x512xf32>
    tpu.vector_store %arg5[%c88, %c0_24], %50 {strides = array<i32>} : memref<108x512xf32, #tpu.memory_space<vmem>>, vector<4x512xf32>,
    %52 = vector.extract_strided_slice %5 {offsets = [0, 212], sizes = [4, 512], strides = [1, 1]} : vector<4x734xf32> to vector<4x512xf32>
    %c92 = arith.constant 92 : index
    %c0_25 = arith.constant 0 : index
    %53 = vector.load %arg5[%c92, %c0_25] : memref<108x512xf32, #tpu.memory_space<vmem>>, vector<4x512xf32>
    tpu.vector_store %arg5[%c92, %c0_25], %52 {strides = array<i32>} : memref<108x512xf32, #tpu.memory_space<vmem>>, vector<4x512xf32>,
    %54 = vector.extract_strided_slice %5 {offsets = [0, 220], sizes = [4, 512], strides = [1, 1]} : vector<4x734xf32> to vector<4x512xf32>
    %c96 = arith.constant 96 : index
    %c0_26 = arith.constant 0 : index
    %55 = vector.load %arg5[%c96, %c0_26] : memref<108x512xf32, #tpu.memory_space<vmem>>, vector<4x512xf32>
    tpu.vector_store %arg5[%c96, %c0_26], %54 {strides = array<i32>} : memref<108x512xf32, #tpu.memory_space<vmem>>, vector<4x512xf32>,
    %56 = vector.extract_strided_slice %5 {offsets = [0, 221], sizes = [4, 512], strides = [1, 1]} : vector<4x734xf32> to vector<4x512xf32>
    %c100 = arith.constant 100 : index
    %c0_27 = arith.constant 0 : index
    %57 = vector.load %arg5[%c100, %c0_27] : memref<108x512xf32, #tpu.memory_space<vmem>>, vector<4x512xf32>
    tpu.vector_store %arg5[%c100, %c0_27], %56 {strides = array<i32>} : memref<108x512xf32, #tpu.memory_space<vmem>>, vector<4x512xf32>,
    %58 = vector.extract_strided_slice %5 {offsets = [0, 222], sizes = [4, 512], strides = [1, 1]} : vector<4x734xf32> to vector<4x512xf32>
    %c104 = arith.constant 104 : index
    %c0_28 = arith.constant 0 : index
    %59 = vector.load %arg5[%c104, %c0_28] : memref<108x512xf32, #tpu.memory_space<vmem>>, vector<4x512xf32>
    tpu.vector_store %arg5[%c104, %c0_28], %58 {strides = array<i32>} : memref<108x512xf32, #tpu.memory_space<vmem>>, vector<4x512xf32>,
    %c0_29 = arith.constant 0 : index
    %c0_30 = arith.constant 0 : index
    %60 = vector.load %arg3[%c0_29, %c0_30] : memref<8x108xf32, #tpu.memory_space<vmem>>, vector<8x108xf32>
    %c0_31 = arith.constant 0 : index
    %c0_32 = arith.constant 0 : index
    %61 = vector.load %arg5[%c0_31, %c0_32] : memref<108x512xf32, #tpu.memory_space<vmem>>, vector<108x512xf32>
    %cst = arith.constant dense<0.000000e+00> : vector<8x512xf32>
    %62 = tpu.matmul %60, %61, %cst {dimension_numbers = #tpu.dot_dimension_numbers<[1], [0], [0], [1], [0, 0, 1, 1], [], []>} : vector<8x108xf32>, vector<108x512xf32>, vector<8x512xf32> -> vector<8x512xf32>
    %cst_33 = arith.constant 0.000000e+00 : f32
    %63 = vector.broadcast %cst_33 : f32 to vector<8x512xf32>
    %64 = arith.cmpf ogt, %62, %63 : vector<8x512xf32>
    %cst_34 = arith.constant 0.00999999977 : f32
    %65 = vector.broadcast %cst_34 : f32 to vector<8x512xf32>
    %66 = arith.mulf %65, %62 : vector<8x512xf32>
    %67 = arith.select %64, %62, %66 : vector<8x512xi1>, vector<8x512xf32>
    %c0_35 = arith.constant 0 : index
    %c0_36 = arith.constant 0 : index
    %c0_37 = arith.constant 0 : index
    %68 = vector.load %arg4[%c0_35, %c0_36, %c0_37] : memref<1x8x512xf32, #tpu.memory_space<vmem>>, vector<1x8x512xf32>
    %69 = vector.shape_cast %68 : vector<1x8x512xf32> to vector<8x512xf32>
    %70 = vector.shape_cast %67 : vector<8x512xf32> to vector<1x8x512xf32>
    tpu.vector_store %arg4[%c0_35, %c0_36, %c0_37], %70 {strides = array<i32>} : memref<1x8x512xf32, #tpu.memory_space<vmem>>, vector<1x8x512xf32>,
    return
  }
  func.func @transform_0(%arg0: i32, %arg1: i32) -> (i32, i32, i32) {
    %c0_i32 = arith.constant 0 : i32
    %c0_i32_0 = arith.constant 0 : i32
    %c0_i32_1 = arith.constant 0 : i32
    return %arg0, %c0_i32, %c0_i32_0 : i32, i32, i32
  }
  func.func @transform_1(%arg0: i32, %arg1: i32) -> (i32, i32) {
    %c0_i32 = arith.constant 0 : i32
    %c0_i32_0 = arith.constant 0 : i32
    %c0_i32_1 = arith.constant 0 : i32
    return %c0_i32, %c0_i32_0 : i32, i32
  }
  func.func @transform_2(%arg0: i32, %arg1: i32) -> (i32, i32, i32) {
    %c0_i32 = arith.constant 0 : i32
    %c0_i32_0 = arith.constant 0 : i32
    return %arg0, %c0_i32, %arg1 : i32, i32, i32
  }
}

</mosaic_0001>

<llo_original>
// kernel: tpu_custom_call.1
$region0: #{tpu_custom_call.1}
  #allocation0 [shape = 'u32[]', space=smem, size = 0x4, offset = 0x4, fixed_abs, tag = 'smem constant byte address 0x4 - core index']
  #allocation1 [shape = 'u32[72,128]{1,0:T(1,128)}', space=vmem, size = 0x9000, scoped, tag = 'internal scratch']
  #allocation2 [shape = 'f32[108,512]{1,0:T(8,128)}', space=vmem, size = 0x38000, scoped, tag = 'scratch operand']
  %s0 = inlined_call_operand.hbm [shape: bf16[2,4,800], index: 0, kind: input, shape index: {}]
  %s1 = inlined_call_operand.hbm [shape: f32[8,108], index: 1, kind: input, shape index: {}]
  %s2 = inlined_call_operand.hbm [shape: f32[2,8,512], index: 2, kind: output, shape index: {}]
  %s3 = sld [smem:[#allocation0]]
  $region49: #{tpu_custom_call.1} parent=0
    _
  %s5 = ssub.s32 1, %s3
  %s6 = scalar_select 0, %s5, %s3
  $region1: #{tpu_custom_call.1} parent=0
    #allocation3 [shape = 'u8[14336]{0}', space=vmem, size = 0x3800, scoped, tag = 'input window, operand 0']
    #allocation4 [shape = 's32[2]{0}', space=sflag, size = 0x8, scoped, tag = 'scoped memory for tpu_custom_call.1']
    #allocation5 [shape = 's32[2]{0}', space=sflag, size = 0x8, scoped, tag = 'scoped memory for tpu_custom_call.1']
    #allocation6 [shape = 'u8[4096]{0}', space=vmem, size = 0x1000, scoped, tag = 'input window, operand 1, single buffered']
    #allocation7 [shape = 's32[1]{0}', space=sflag, size = 0x4, scoped, tag = 'scoped memory for tpu_custom_call.1']
    #allocation8 [shape = 'u8[32768]{0}', space=vmem, size = 0x8000, scoped, tag = 'output window, operand 0']
    %7 = vsyncpa [#allocation4], 0
    %s8 = scalar_lea.sflag [#allocation4], 1
    %9 = vsyncpa %s8, 0
    %10 = vsyncpa [#allocation7], 0
    %11 = vsyncpa [#allocation5], 0
    %s12 = scalar_lea.sflag [#allocation5], 1
    %13 = vsyncpa %s12, 0
    loop: start=0, step=1, limit=4
    $region2: #{tpu_custom_call.1} parent=1 // loop_pre_header
      _
    $region3: #{tpu_custom_call.1} parent=1 // loop_header
      %s15 = sphi 0, %s19
      %p16 = scmp.ge.s32.totalorder %s15, 4
      %s22 = sphi 0, %s34
      %s23 = sphi 0, %s30
      %s24 = sphi 0, %s22
      %s25 = sphi 0, %s23
      %s26 = sphi 0, %s24
      %s27 = sphi 0, %s25
      %s37 = sphi 0, %s39
      %s40 = sphi 0, %s37
      %s41 = sphi 0, %s40
      %s57 = sphi 0, %s41
      %s61 = sphi 0, %s61
      %s63 = sphi 0, %s61
      %s64 = sphi 0, %s63
      %s78 = sphi 0, %s64
      %s86 = sphi 0, %s88
      %s89 = sphi 0, %s86
      %s90 = sphi 0, %s89
      %s106 = sphi 0, %s90
    $region4: #{tpu_custom_call.1} parent=1 // loop_header_branch
      %18 = sbr.rel (%p16) target = $region8
    $region5: #{tpu_custom_call.1} parent=1 // loop_body
      %s20 = ssub.s32 %s15, 1
      %s21 = ssub.s32 %s15, 2
      %s28 = sadd.s32 1, %s23
      %p29 = scmp.ge.s32.totalorder %s28, 1
      %s30 = scalar_select %p29, 0, %s28
      %s31 = sadd.s32 1, %s22
      %s32 = scalar_select %p29, %s31, %s22
      %p33 = scmp.ge.s32.totalorder %s32, 2
      %s34 = scalar_select %p33, 0, %s32
      %s35 = ssub.s32 %s22, %s34
      %p36 = scmp.eq.s32.totalorder %s35, 0
      %s38 = sadd.s32 %s37, 1
      %s39 = scalar_select %p36, %s37, %s38
      %p42 = pneg %p36
      %p43 = scmp.eq.s32.totalorder %s15, 1
      %p44 = por %p42, %p43
      %p45 = scmp.ne.s32.totalorder %s37, %s40
      %p46 = scmp.eq.s32.totalorder %s15, 0
      %p47 = por %p45, %p46
      %p48 = scmp.ne.s32.totalorder %s37, %s40
      %p49 = scmp.eq.s32.totalorder %s20, 1
      %p50 = por %p48, %p49
      %p51 = scmp.ne.s32.totalorder %s40, %s41
      %p52 = scmp.eq.s32.totalorder %s20, 0
      %p53 = por %p51, %p52
      %p54 = scmp.ne.s32.totalorder %s40, %s41
      %p55 = scmp.eq.s32.totalorder %s21, 1
      %p56 = por %p54, %p55
      %p58 = scmp.ne.s32.totalorder %s41, %s57
      %p59 = scmp.eq.s32.totalorder %s21, 0
      %p60 = por %p58, %p59
      %s62 = sadd.s32 %s61, 1
      %p65 = scmp.eq.s32.totalorder %s15, 1
      %p66 = scmp.ne.s32.totalorder %s61, %s63
      %p67 = scmp.eq.s32.totalorder %s15, 0
      %p68 = por %p66, %p67
      %p69 = scmp.ne.s32.totalorder %s61, %s63
      %p70 = scmp.eq.s32.totalorder %s20, 1
      %p71 = por %p69, %p70
      %p72 = scmp.ne.s32.totalorder %s63, %s64
      %p73 = scmp.eq.s32.totalorder %s20, 0
      %p74 = por %p72, %p73
      %p75 = scmp.ne.s32.totalorder %s63, %s64
      %p76 = scmp.eq.s32.totalorder %s21, 1
      %p77 = por %p75, %p76
      %p79 = scmp.ne.s32.totalorder %s64, %s78
      %p80 = scmp.eq.s32.totalorder %s21, 0
      %p81 = por %p79, %p80
      %s82 = ssub.s32 %s22, %s34
      %s83 = ssub.s32 %s23, %s30
      %s84 = sor.u32 %s82, %s83
      %p85 = scmp.eq.s32.totalorder %s84, 0
      %s87 = sadd.s32 %s86, 1
      %s88 = scalar_select %p85, %s86, %s87
      %p91 = pneg %p85
      %p92 = scmp.eq.s32.totalorder %s15, 1
      %p93 = por %p91, %p92
      %p94 = scmp.ne.s32.totalorder %s86, %s89
      %p95 = scmp.eq.s32.totalorder %s15, 0
      %p96 = por %p94, %p95
      %p97 = scmp.ne.s32.totalorder %s86, %s89
      %p98 = scmp.eq.s32.totalorder %s20, 1
      %p99 = por %p97, %p98
      %p100 = scmp.ne.s32.totalorder %s89, %s90
      %p101 = scmp.eq.s32.totalorder %s20, 0
      %p102 = por %p100, %p101
      %p103 = scmp.ne.s32.totalorder %s89, %s90
      %p104 = scmp.eq.s32.totalorder %s21, 1
      %p105 = por %p103, %p104
      %p107 = scmp.ne.s32.totalorder %s90, %s106
      %p108 = scmp.eq.s32.totalorder %s21, 0
      %p109 = por %p107, %p108
      %p110 = scmp.le.s32.totalorder 1, %s15
      %p111 = scmp.lt.s32.totalorder %s15, 3
      %p112 = pnand %p110, %p111
      %p113 = pneg %p112
      // Predicated region
      $region9: #{tpu_custom_call.1} parent=5 // pred_check
        _
      $region10: #{tpu_custom_call.1} parent=5 // pred_check_branch
        %115 = sbr.rel (%p112) target = $region12
      $region11: #{tpu_custom_call.1} parent=5 // pred_region
        %s116 = ssub.s32 %s15, 1
        // Predicated region
        $region13: #{tpu_custom_call.1} parent=11 // pred_check
          %p117 = pneg %p74
        $region14: #{tpu_custom_call.1} parent=11 // pred_check_branch
          %119 = sbr.rel (%p117) target = $region16
        $region15: #{tpu_custom_call.1} parent=11 // pred_region
          %121 = vsyncadd [#allocation7], 0
          %s123 = sshll.u32 %s1, 4
          %s124 = int_to_ptr.hbm [resolvable:$true] %s123
          %s125 = sshll.u32 [#allocation6], 4
          %s126 = int_to_ptr.vmem [resolvable:$true] %s125
          %128 = dma.hbm_to_vmem [thread:$0]  %s124, 128, %s126, [#allocation7]
        $region16: #{tpu_custom_call.1} parent=11 // pred_fallthru
          _
      $region12: #{tpu_custom_call.1} parent=5 // pred_fallthru
        _
      %p129 = scmp.lt.s32.totalorder %s15, 2
      // Predicated region
      $region17: #{tpu_custom_call.1} parent=5 // pred_check
        %p130 = pneg %p129
      $region18: #{tpu_custom_call.1} parent=5 // pred_check_branch
        %132 = sbr.rel (%p130) target = $region20
      $region19: #{tpu_custom_call.1} parent=5 // pred_region
        // Predicated region
        $region21: #{tpu_custom_call.1} parent=19 // pred_check
          %p133 = pneg %p47
        $region22: #{tpu_custom_call.1} parent=19 // pred_check_branch
          %135 = sbr.rel (%p133) target = $region24
        $region23: #{tpu_custom_call.1} parent=19 // pred_region
          %s136 = sand.u32 %s37, 1
          %s137 = scalar_lea.sflag [#allocation4], %s136
          %s138 = sand.u32 %s37, 1
          %s139 = smul.addr %s138, 14
          %s140 = scalar_lea.vmem [#allocation3], %s139
          %142 = vsyncadd %s137, 0
          %s143 = smul.addr %s22, 7
          %s144 = smul.addr %s143, 2
          %s145 = scalar_lea.hbm %s0, %s144
          %s147 = sshll.u32 %s145, 4
          %s148 = int_to_ptr.hbm [resolvable:$true] %s147
          %s149 = sshll.u32 %s140, 4
          %s150 = int_to_ptr.vmem [resolvable:$true] %s149
          %152 = dma.hbm_to_vmem [thread:$0]  %s148, 224, %s150, %s137
        $region24: #{tpu_custom_call.1} parent=19 // pred_fallthru
          _
      $region20: #{tpu_custom_call.1} parent=5 // pred_fallthru
        _
      %p153 = scmp.le.s32.totalorder 1, %s15
      %p154 = scmp.lt.s32.totalorder %s15, 3
      %p155 = pnand %p153, %p154
      %p156 = pneg %p155
      // Predicated region
      $region25: #{tpu_custom_call.1} parent=5 // pred_check
        _
      $region26: #{tpu_custom_call.1} parent=5 // pred_check_branch
        %158 = sbr.rel (%p155) target = $region28
      $region27: #{tpu_custom_call.1} parent=5 // pred_region
        %s159 = ssub.s32 %s15, 1
        %s160 = sand.u32 %s40, 1
        %s161 = scalar_lea.sflag [#allocation4], %s160
        %s162 = sand.u32 %s40, 1
        %s163 = smul.addr %s162, 14
        %s164 = scalar_lea.vmem [#allocation3], %s163
        // Predicated region
        $region29: #{tpu_custom_call.1} parent=27 // pred_check
          %p165 = pneg %p53
        $region30: #{tpu_custom_call.1} parent=27 // pred_check_branch
          %167 = sbr.rel (%p165) target = $region32
        $region31: #{tpu_custom_call.1} parent=27 // pred_region
          %169 = dma.done %s161, 224
        $region32: #{tpu_custom_call.1} parent=27 // pred_fallthru
          _
        // Predicated region
        $region33: #{tpu_custom_call.1} parent=27 // pred_check
          %p170 = pneg %p74
        $region34: #{tpu_custom_call.1} parent=27 // pred_check_branch
          %172 = sbr.rel (%p170) target = $region36
        $region35: #{tpu_custom_call.1} parent=27 // pred_region
          %174 = dma.done [#allocation7], 128
        $region36: #{tpu_custom_call.1} parent=27 // pred_fallthru
          _
        %s175 = sand.u32 %s40, 1
        %s176 = scalar_lea.sflag [#allocation4], %s175
        %s177 = sand.u32 %s40, 1
        %s178 = smul.addr %s177, 14
        %s179 = scalar_lea.vmem [#allocation3], %s178
        %p180 = pneg %p53
        %p181 = pneg %p50
        %p182 = pneg %p74
        %p183 = pneg %p71
        %p184 = pneg %p102
        %p185 = pneg %p99
        %s186 = sand.u32 %s89, 1
        %s187 = scalar_lea.sflag [#allocation5], %s186
        %s188 = sand.u32 %s89, 1
        %s189 = smul.addr %s188, 32
        %s190 = scalar_lea.vmem [#allocation8], %s189
        %s191 = smul.u32 4, %s25
        %s192 = smul.u32 %s25, 512
        %s193 = sshra.s32 %s192, 7
        %s194 = sand.u32 %s192, 127
        %s195 = smul.addr %s193, 2
        %s196 = scalar_lea.vmem %s164, %s195 [#allocation3]
        %v197 = vld [vmem:[%s196] sm:$0xff]
        %v198 = vld [vmem:[%s196 + $0x8] sm:$0xf]
        %v199 = vunpack.c.l.bf16 %v197
        %v200 = vunpack.c.h.bf16 %v197
        %v201 = vunpack.c.l.bf16 %v198
        %204 = vst [vmem:[#allocation1] ss:$2 sm:$0xff] %v199
        %s205 = scalar_lea.vmem [#allocation1], 16
        %206 = vst [vmem:[%s205] ss:$2 sm:$0xff] %v200
        %v207 = vld.sshfl [vmem:[#allocation1] sm:$0xff pattern:$0x75316420]
        %v208 = vld.sshfl [vmem:[#allocation1 + $0x8] sm:$0xff pattern:$0x75316420]
        %v209 = vld.sshfl [vmem:[#allocation1 + $0x10] sm:$0xff pattern:$0x75316420]
        %v210 = vld.sshfl [vmem:[#allocation1 + $0x18] sm:$0xff pattern:$0x75316420]
        %215 = vst [vmem:[#allocation2] sm:$0xf] %v207
        %216 = vst [vmem:[#allocation2 + $0x8] sm:$0xf] %v208
        %217 = vst [vmem:[#allocation2 + $0x10] sm:$0xf] %v209
        %218 = vst [vmem:[#allocation2 + $0x18] sm:$0xf] %v210
        %s220 = scalar_lea.vmem [#allocation1], 1
        %221 = vst [vmem:[%s220] ss:$2 sm:$0xff] %v199
        %s222 = scalar_lea.vmem [#allocation1], 17
        %223 = vst [vmem:[%s222] ss:$2 sm:$0xff] %v200
        %s224 = scalar_lea.vmem [#allocation1], 33
        %225 = vst [vmem:[%s224] ss:$2 sm:$0xff] %v201
        %v226 = vld.sshfl [vmem:[#allocation1] sm:$0xff pattern:$0x75316420]
        %v227 = vld.sshfl [vmem:[#allocation1 + $0x8] sm:$0xff pattern:$0x75316420]
        %v228 = vld.sshfl [vmem:[#allocation1 + $0x10] sm:$0xff pattern:$0x75316420]
        %v229 = vld.sshfl [vmem:[#allocation1 + $0x18] sm:$0xff pattern:$0x75316420]
        %v230 = vld.sshfl [vmem:[#allocation1 + $0x20] sm:$0xff pattern:$0x75316420]
        %231 = vrot.lane.b32.xlu0 %v226, 127
        %v232 = vpop.permute.xlu0 %231
        %233 = vrot.lane.b32.xlu0 %v227, 127
        %v234 = vpop.permute.xlu0 %233
        %235 = vrot.lane.b32.xlu0 %v228, 127
        %v236 = vpop.permute.xlu0 %235
        %237 = vrot.lane.b32.xlu0 %v229, 127
        %v238 = vpop.permute.xlu0 %237
        %239 = vrot.lane.b32.xlu0 %v230, 127
        %v240 = vpop.permute.xlu0 %239
        %vm241 = vcmask 1039360
        %v242 = vsel %vm241, %v232, %v234
        %v243 = vsel %vm241, %v234, %v236
        %v244 = vsel %vm241, %v236, %v238
        %v245 = vsel %vm241, %v238, %v240
        %250 = vst [vmem:[#allocation2] sm:$0xf0] %v242
        %251 = vst [vmem:[#allocation2 + $0x8] sm:$0xf0] %v243
        %252 = vst [vmem:[#allocation2 + $0x10] sm:$0xf0] %v244
        %253 = vst [vmem:[#allocation2 + $0x18] sm:$0xf0] %v245
        %254 = vst [vmem:[#allocation1] ss:$2 sm:$0xff] %v199
        %s255 = scalar_lea.vmem [#allocation1], 16
        %256 = vst [vmem:[%s255] ss:$2 sm:$0xff] %v200
        %s257 = scalar_lea.vmem [#allocation1], 32
        %258 = vst [vmem:[%s257] ss:$2 sm:$0xff] %v201
        %v259 = vld.sshfl [vmem:[#allocation1] sm:$0xff pattern:$0x75316420]
        %v260 = vld.sshfl [vmem:[#allocation1 + $0x8] sm:$0xff pattern:$0x75316420]
        %v261 = vld.sshfl [vmem:[#allocation1 + $0x10] sm:$0xff pattern:$0x75316420]
        %v262 = vld.sshfl [vmem:[#allocation1 + $0x18] sm:$0xff pattern:$0x75316420]
        %v263 = vld.sshfl [vmem:[#allocation1 + $0x20] sm:$0xff pattern:$0x75316420]
        %264 = vrot.lane.b32.xlu0 %v259, 126
        %v265 = vpop.permute.xlu0 %264
        %266 = vrot.lane.b32.xlu0 %v260, 126
        %v267 = vpop.permute.xlu0 %266
        %268 = vrot.lane.b32.xlu0 %v261, 126
        %v269 = vpop.permute.xlu0 %268
        %270 = vrot.lane.b32.xlu0 %v262, 126
        %v271 = vpop.permute.xlu0 %270
        %272 = vrot.lane.b32.xlu0 %v263, 126
        %v273 = vpop.permute.xlu0 %272
        %vm274 = vcmask 1031168
        %v275 = vsel %vm274, %v265, %v267
        %v276 = vsel %vm274, %v267, %v269
        %v277 = vsel %vm274, %v269, %v271
        %v278 = vsel %vm274, %v271, %v273
        %283 = vst [vmem:[#allocation2 + $0x20] sm:$0xf] %v275
        %284 = vst [vmem:[#allocation2 + $0x28] sm:$0xf] %v276
        %285 = vst [vmem:[#allocation2 + $0x30] sm:$0xf] %v277
        %286 = vst [vmem:[#allocation2 + $0x38] sm:$0xf] %v278
        %s287 = scalar_lea.vmem [#allocation1], 1
        %288 = vst [vmem:[%s287] ss:$2 sm:$0xff] %v199
        %s289 = scalar_lea.vmem [#allocation1], 17
        %290 = vst [vmem:[%s289] ss:$2 sm:$0xff] %v200
        %s291 = scalar_lea.vmem [#allocation1], 33
        %292 = vst [vmem:[%s291] ss:$2 sm:$0xff] %v201
        %v293 = vld.sshfl [vmem:[#allocation1] sm:$0xff pattern:$0x75316420]
        %v294 = vld.sshfl [vmem:[#allocation1 + $0x8] sm:$0xff pattern:$0x75316420]
        %v295 = vld.sshfl [vmem:[#allocation1 + $0x10] sm:$0xff pattern:$0x75316420]
        %v296 = vld.sshfl [vmem:[#allocation1 + $0x18] sm:$0xff pattern:$0x75316420]
        %v297 = vld.sshfl [vmem:[#allocation1 + $0x20] sm:$0xff pattern:$0x75316420]
        %298 = vrot.lane.b32.xlu0 %v293, 118
        %v299 = vpop.permute.xlu0 %298
        %300 = vrot.lane.b32.xlu0 %v294, 118
        %v301 = vpop.permute.xlu0 %300
        %302 = vrot.lane.b32.xlu0 %v295, 118
        %v303 = vpop.permute.xlu0 %302
        %304 = vrot.lane.b32.xlu0 %v296, 118
        %v305 = vpop.permute.xlu0 %304
        %306 = vrot.lane.b32.xlu0 %v297, 118
        %v307 = vpop.permute.xlu0 %306
        %vm308 = vcmask 965632
        %v309 = vsel %vm308, %v299, %v301
        %v310 = vsel %vm308, %v301, %v303
        %v311 = vsel %vm308, %v303, %v305
        %v312 = vsel %vm308, %v305, %v307
        %317 = vst [vmem:[#allocation2 + $0x20] sm:$0xf0] %v309
        %318 = vst [vmem:[#allocation2 + $0x28] sm:$0xf0] %v310
        %319 = vst [vmem:[#allocation2 + $0x30] sm:$0xf0] %v311
        %320 = vst [vmem:[#allocation2 + $0x38] sm:$0xf0] %v312
        %321 = vst [vmem:[#allocation1] ss:$2 sm:$0xff] %v199
        %s322 = scalar_lea.vmem [#allocation1], 16
        %323 = vst [vmem:[%s322] ss:$2 sm:$0xff] %v200
        %s324 = scalar_lea.vmem [#allocation1], 32
        %325 = vst [vmem:[%s324] ss:$2 sm:$0xff] %v201
        %v326 = vld.sshfl [vmem:[#allocation1] sm:$0xff pattern:$0x75316420]
        %v327 = vld.sshfl [vmem:[#allocation1 + $0x8] sm:$0xff pattern:$0x75316420]
        %v328 = vld.sshfl [vmem:[#allocation1 + $0x10] sm:$0xff pattern:$0x75316420]
        %v329 = vld.sshfl [vmem:[#allocation1 + $0x18] sm:$0xff pattern:$0x75316420]
        %v330 = vld.sshfl [vmem:[#allocation1 + $0x20] sm:$0xff pattern:$0x75316420]
        %331 = vrot.lane.b32.xlu0 %v326, 117
        %v332 = vpop.permute.xlu0 %331
        %333 = vrot.lane.b32.xlu0 %v327, 117
        %v334 = vpop.permute.xlu0 %333
        %335 = vrot.lane.b32.xlu0 %v328, 117
        %v336 = vpop.permute.xlu0 %335
        %337 = vrot.lane.b32.xlu0 %v329, 117
        %v338 = vpop.permute.xlu0 %337
        %339 = vrot.lane.b32.xlu0 %v330, 117
        %v340 = vpop.permute.xlu0 %339
        %vm341 = vcmask 957440
        %v342 = vsel %vm341, %v332, %v334
        %v343 = vsel %vm341, %v334, %v336
        %v344 = vsel %vm341, %v336, %v338
        %v345 = vsel %vm341, %v338, %v340
        %350 = vst [vmem:[#allocation2 + $0x40] sm:$0xf] %v342
        %351 = vst [vmem:[#allocation2 + $0x48] sm:$0xf] %v343
        %352 = vst [vmem:[#allocation2 + $0x50] sm:$0xf] %v344
        %353 = vst [vmem:[#allocation2 + $0x58] sm:$0xf] %v345
        %s354 = scalar_lea.vmem [#allocation1], 1
        %355 = vst [vmem:[%s354] ss:$2 sm:$0xff] %v199
        %s356 = scalar_lea.vmem [#allocation1], 17
        %357 = vst [vmem:[%s356] ss:$2 sm:$0xff] %v200
        %s358 = scalar_lea.vmem [#allocation1], 33
        %359 = vst [vmem:[%s358] ss:$2 sm:$0xff] %v201
        %v360 = vld.sshfl [vmem:[#allocation1] sm:$0xff pattern:$0x75316420]
        %v361 = vld.sshfl [vmem:[#allocation1 + $0x8] sm:$0xff pattern:$0x75316420]
        %v362 = vld.sshfl [vmem:[#allocation1 + $0x10] sm:$0xff pattern:$0x75316420]
        %v363 = vld.sshfl [vmem:[#allocation1 + $0x18] sm:$0xff pattern:$0x75316420]
        %v364 = vld.sshfl [vmem:[#allocation1 + $0x20] sm:$0xff pattern:$0x75316420]
        %365 = vrot.lane.b32.xlu0 %v360, 116
        %v366 = vpop.permute.xlu0 %365
        %367 = vrot.lane.b32.xlu0 %v361, 116
        %v368 = vpop.permute.xlu0 %367
        %369 = vrot.lane.b32.xlu0 %v362, 116
        %v370 = vpop.permute.xlu0 %369
        %371 = vrot.lane.b32.xlu0 %v363, 116
        %v372 = vpop.permute.xlu0 %371
        %373 = vrot.lane.b32.xlu0 %v364, 116
        %v374 = vpop.permute.xlu0 %373
        %vm375 = vcmask 949248
        %v376 = vsel %vm375, %v366, %v368
        %v377 = vsel %vm375, %v368, %v370
        %v378 = vsel %vm375, %v370, %v372
        %v379 = vsel %vm375, %v372, %v374
        %384 = vst [vmem:[#allocation2 + $0x40] sm:$0xf0] %v376
        %385 = vst [vmem:[#allocation2 + $0x48] sm:$0xf0] %v377
        %386 = vst [vmem:[#allocation2 + $0x50] sm:$0xf0] %v378
        %387 = vst [vmem:[#allocation2 + $0x58] sm:$0xf0] %v379
        %388 = vst [vmem:[#allocation1] ss:$2 sm:$0xff] %v199
        %s389 = scalar_lea.vmem [#allocation1], 16
        %390 = vst [vmem:[%s389] ss:$2 sm:$0xff] %v200
        %s391 = scalar_lea.vmem [#allocation1], 32
        %392 = vst [vmem:[%s391] ss:$2 sm:$0xff] %v201
        %v393 = vld.sshfl [vmem:[#allocation1] sm:$0xff pattern:$0x75316420]
        %v394 = vld.sshfl [vmem:[#allocation1 + $0x8] sm:$0xff pattern:$0x75316420]
        %v395 = vld.sshfl [vmem:[#allocation1 + $0x10] sm:$0xff pattern:$0x75316420]
        %v396 = vld.sshfl [vmem:[#allocation1 + $0x18] sm:$0xff pattern:$0x75316420]
        %v397 = vld.sshfl [vmem:[#allocation1 + $0x20] sm:$0xff pattern:$0x75316420]
        %398 = vrot.lane.b32.xlu0 %v393, 108
        %v399 = vpop.permute.xlu0 %398
        %400 = vrot.lane.b32.xlu0 %v394, 108
        %v401 = vpop.permute.xlu0 %400
        %402 = vrot.lane.b32.xlu0 %v395, 108
        %v403 = vpop.permute.xlu0 %402
        %404 = vrot.lane.b32.xlu0 %v396, 108
        %v405 = vpop.permute.xlu0 %404
        %406 = vrot.lane.b32.xlu0 %v397, 108
        %v407 = vpop.permute.xlu0 %406
        %vm408 = vcmask 883712
        %v409 = vsel %vm408, %v399, %v401
        %v410 = vsel %vm408, %v401, %v403
        %v411 = vsel %vm408, %v403, %v405
        %v412 = vsel %vm408, %v405, %v407
        %417 = vst [vmem:[#allocation2 + $0x60] sm:$0xf] %v409
        %418 = vst [vmem:[#allocation2 + $0x68] sm:$0xf] %v410
        %419 = vst [vmem:[#allocation2 + $0x70] sm:$0xf] %v411
        %420 = vst [vmem:[#allocation2 + $0x78] sm:$0xf] %v412
        %s421 = scalar_lea.vmem [#allocation1], 1
        %422 = vst [vmem:[%s421] ss:$2 sm:$0xff] %v199
        %s423 = scalar_lea.vmem [#allocation1], 17
        %424 = vst [vmem:[%s423] ss:$2 sm:$0xff] %v200
        %s425 = scalar_lea.vmem [#allocation1], 33
        %426 = vst [vmem:[%s425] ss:$2 sm:$0xff] %v201
        %v427 = vld.sshfl [vmem:[#allocation1] sm:$0xff pattern:$0x75316420]
        %v428 = vld.sshfl [vmem:[#allocation1 + $0x8] sm:$0xff pattern:$0x75316420]
        %v429 = vld.sshfl [vmem:[#allocation1 + $0x10] sm:$0xff pattern:$0x75316420]
        %v430 = vld.sshfl [vmem:[#allocation1 + $0x18] sm:$0xff pattern:$0x75316420]
        %v431 = vld.sshfl [vmem:[#allocation1 + $0x20] sm:$0xff pattern:$0x75316420]
        %432 = vrot.lane.b32.xlu0 %v427, 107
        %v433 = vpop.permute.xlu0 %432
        %434 = vrot.lane.b32.xlu0 %v428, 107
        %v435 = vpop.permute.xlu0 %434
        %436 = vrot.lane.b32.xlu0 %v429, 107
        %v437 = vpop.permute.xlu0 %436
        %438 = vrot.lane.b32.xlu0 %v430, 107
        %v439 = vpop.permute.xlu0 %438
        %440 = vrot.lane.b32.xlu0 %v431, 107
        %v441 = vpop.permute.xlu0 %440
        %vm442 = vcmask 875520
        %v443 = vsel %vm442, %v433, %v435
        %v444 = vsel %vm442, %v435, %v437
        %v445 = vsel %vm442, %v437, %v439
        %v446 = vsel %vm442, %v439, %v441
        %451 = vst [vmem:[#allocation2 + $0x60] sm:$0xf0] %v443
        %452 = vst [vmem:[#allocation2 + $0x68] sm:$0xf0] %v444
        %453 = vst [vmem:[#allocation2 + $0x70] sm:$0xf0] %v445
        %454 = vst [vmem:[#allocation2 + $0x78] sm:$0xf0] %v446
        %455 = vst [vmem:[#allocation1] ss:$2 sm:$0xff] %v199
        %s456 = scalar_lea.vmem [#allocation1], 16
        %457 = vst [vmem:[%s456] ss:$2 sm:$0xff] %v200
        %s458 = scalar_lea.vmem [#allocation1], 32
        %459 = vst [vmem:[%s458] ss:$2 sm:$0xff] %v201
        %v460 = vld.sshfl [vmem:[#allocation1] sm:$0xff pattern:$0x75316420]
        %v461 = vld.sshfl [vmem:[#allocation1 + $0x8] sm:$0xff pattern:$0x75316420]
        %v462 = vld.sshfl [vmem:[#allocation1 + $0x10] sm:$0xff pattern:$0x75316420]
        %v463 = vld.sshfl [vmem:[#allocation1 + $0x18] sm:$0xff pattern:$0x75316420]
        %v464 = vld.sshfl [vmem:[#allocation1 + $0x20] sm:$0xff pattern:$0x75316420]
        %465 = vrot.lane.b32.xlu0 %v460, 106
        %v466 = vpop.permute.xlu0 %465
        %467 = vrot.lane.b32.xlu0 %v461, 106
        %v468 = vpop.permute.xlu0 %467
        %469 = vrot.lane.b32.xlu0 %v462, 106
        %v470 = vpop.permute.xlu0 %469
        %471 = vrot.lane.b32.xlu0 %v463, 106
        %v472 = vpop.permute.xlu0 %471
        %473 = vrot.lane.b32.xlu0 %v464, 106
        %v474 = vpop.permute.xlu0 %473
        %vm475 = vcmask 867328
        %v476 = vsel %vm475, %v466, %v468
        %v477 = vsel %vm475, %v468, %v470
        %v478 = vsel %vm475, %v470, %v472
        %v479 = vsel %vm475, %v472, %v474
        %484 = vst [vmem:[#allocation2 + $0x80] sm:$0xf] %v476
        %485 = vst [vmem:[#allocation2 + $0x88] sm:$0xf] %v477
        %486 = vst [vmem:[#allocation2 + $0x90] sm:$0xf] %v478
        %487 = vst [vmem:[#allocation2 + $0x98] sm:$0xf] %v479
        %s488 = scalar_lea.vmem [#allocation1], 1
        %489 = vst [vmem:[%s488] ss:$2 sm:$0xff] %v199
        %s490 = scalar_lea.vmem [#allocation1], 17
        %491 = vst [vmem:[%s490] ss:$2 sm:$0xff] %v200
        %s492 = scalar_lea.vmem [#allocation1], 33
        %493 = vst [vmem:[%s492] ss:$2 sm:$0xff] %v201
        %v494 = vld.sshfl [vmem:[#allocation1] sm:$0xff pattern:$0x75316420]
        %v495 = vld.sshfl [vmem:[#allocation1 + $0x8] sm:$0xff pattern:$0x75316420]
        %v496 = vld.sshfl [vmem:[#allocation1 + $0x10] sm:$0xff pattern:$0x75316420]
        %v497 = vld.sshfl [vmem:[#allocation1 + $0x18] sm:$0xff pattern:$0x75316420]
        %v498 = vld.sshfl [vmem:[#allocation1 + $0x20] sm:$0xff pattern:$0x75316420]
        %499 = vrot.lane.b32.xlu0 %v494, 28
        %v500 = vpop.permute.xlu0 %499
        %501 = vrot.lane.b32.xlu0 %v495, 28
        %v502 = vpop.permute.xlu0 %501
        %503 = vrot.lane.b32.xlu0 %v496, 28
        %v504 = vpop.permute.xlu0 %503
        %505 = vrot.lane.b32.xlu0 %v497, 28
        %v506 = vpop.permute.xlu0 %505
        %507 = vrot.lane.b32.xlu0 %v498, 28
        %v508 = vpop.permute.xlu0 %507
        %vm509 = vcmask 228352
        %v510 = vsel %vm509, %v500, %v502
        %v511 = vsel %vm509, %v502, %v504
        %v512 = vsel %vm509, %v504, %v506
        %v513 = vsel %vm509, %v506, %v508
        %518 = vst [vmem:[#allocation2 + $0x80] sm:$0xf0] %v510
        %519 = vst [vmem:[#allocation2 + $0x88] sm:$0xf0] %v511
        %520 = vst [vmem:[#allocation2 + $0x90] sm:$0xf0] %v512
        %521 = vst [vmem:[#allocation2 + $0x98] sm:$0xf0] %v513
        %522 = vst [vmem:[#allocation1] ss:$2 sm:$0xff] %v199
        %s523 = scalar_lea.vmem [#allocation1], 16
        %524 = vst [vmem:[%s523] ss:$2 sm:$0xff] %v200
        %s525 = scalar_lea.vmem [#allocation1], 32
        %526 = vst [vmem:[%s525] ss:$2 sm:$0xff] %v201
        %v527 = vld.sshfl [vmem:[#allocation1] sm:$0xff pattern:$0x75316420]
        %v528 = vld.sshfl [vmem:[#allocation1 + $0x8] sm:$0xff pattern:$0x75316420]
        %v529 = vld.sshfl [vmem:[#allocation1 + $0x10] sm:$0xff pattern:$0x75316420]
        %v530 = vld.sshfl [vmem:[#allocation1 + $0x18] sm:$0xff pattern:$0x75316420]
        %v531 = vld.sshfl [vmem:[#allocation1 + $0x20] sm:$0xff pattern:$0x75316420]
        %532 = vrot.lane.b32.xlu0 %v527, 27
        %v533 = vpop.permute.xlu0 %532
        %534 = vrot.lane.b32.xlu0 %v528, 27
        %v535 = vpop.permute.xlu0 %534
        %536 = vrot.lane.b32.xlu0 %v529, 27
        %v537 = vpop.permute.xlu0 %536
        %538 = vrot.lane.b32.xlu0 %v530, 27
        %v539 = vpop.permute.xlu0 %538
        %540 = vrot.lane.b32.xlu0 %v531, 27
        %v541 = vpop.permute.xlu0 %540
        %vm542 = vcmask 220160
        %v543 = vsel %vm542, %v533, %v535
        %v544 = vsel %vm542, %v535, %v537
        %v545 = vsel %vm542, %v537, %v539
        %v546 = vsel %vm542, %v539, %v541
        %551 = vst [vmem:[#allocation2 + $0xa0] sm:$0xf] %v543
        %552 = vst [vmem:[#allocation2 + $0xa8] sm:$0xf] %v544
        %553 = vst [vmem:[#allocation2 + $0xb0] sm:$0xf] %v545
        %554 = vst [vmem:[#allocation2 + $0xb8] sm:$0xf] %v546
        %s555 = scalar_lea.vmem [#allocation1], 1
        %556 = vst [vmem:[%s555] ss:$2 sm:$0xff] %v199
        %s557 = scalar_lea.vmem [#allocation1], 17
        %558 = vst [vmem:[%s557] ss:$2 sm:$0xff] %v200
        %s559 = scalar_lea.vmem [#allocation1], 33
        %560 = vst [vmem:[%s559] ss:$2 sm:$0xff] %v201
        %v561 = vld.sshfl [vmem:[#allocation1] sm:$0xff pattern:$0x75316420]
        %v562 = vld.sshfl [vmem:[#allocation1 + $0x8] sm:$0xff pattern:$0x75316420]
        %v563 = vld.sshfl [vmem:[#allocation1 + $0x10] sm:$0xff pattern:$0x75316420]
        %v564 = vld.sshfl [vmem:[#allocation1 + $0x18] sm:$0xff pattern:$0x75316420]
        %v565 = vld.sshfl [vmem:[#allocation1 + $0x20] sm:$0xff pattern:$0x75316420]
        %566 = vrot.lane.b32.xlu0 %v561, 26
        %v567 = vpop.permute.xlu0 %566
        %568 = vrot.lane.b32.xlu0 %v562, 26
        %v569 = vpop.permute.xlu0 %568
        %570 = vrot.lane.b32.xlu0 %v563, 26
        %v571 = vpop.permute.xlu0 %570
        %572 = vrot.lane.b32.xlu0 %v564, 26
        %v573 = vpop.permute.xlu0 %572
        %574 = vrot.lane.b32.xlu0 %v565, 26
        %v575 = vpop.permute.xlu0 %574
        %vm576 = vcmask 211968
        %v577 = vsel %vm576, %v567, %v569
        %v578 = vsel %vm576, %v569, %v571
        %v579 = vsel %vm576, %v571, %v573
        %v580 = vsel %vm576, %v573, %v575
        %585 = vst [vmem:[#allocation2 + $0xa0] sm:$0xf0] %v577
        %586 = vst [vmem:[#allocation2 + $0xa8] sm:$0xf0] %v578
        %587 = vst [vmem:[#allocation2 + $0xb0] sm:$0xf0] %v579
        %588 = vst [vmem:[#allocation2 + $0xb8] sm:$0xf0] %v580
        %589 = vst [vmem:[#allocation1] ss:$2 sm:$0xff] %v199
        %s590 = scalar_lea.vmem [#allocation1], 16
        %591 = vst [vmem:[%s590] ss:$2 sm:$0xff] %v200
        %s592 = scalar_lea.vmem [#allocation1], 32
        %593 = vst [vmem:[%s592] ss:$2 sm:$0xff] %v201
        %v594 = vld.sshfl [vmem:[#allocation1] sm:$0xff pattern:$0x75316420]
        %v595 = vld.sshfl [vmem:[#allocation1 + $0x8] sm:$0xff pattern:$0x75316420]
        %v596 = vld.sshfl [vmem:[#allocation1 + $0x10] sm:$0xff pattern:$0x75316420]
        %v597 = vld.sshfl [vmem:[#allocation1 + $0x18] sm:$0xff pattern:$0x75316420]
        %v598 = vld.sshfl [vmem:[#allocation1 + $0x20] sm:$0xff pattern:$0x75316420]
        %599 = vrot.lane.b32.xlu0 %v594, 18
        %v600 = vpop.permute.xlu0 %599
        %601 = vrot.lane.b32.xlu0 %v595, 18
        %v602 = vpop.permute.xlu0 %601
        %603 = vrot.lane.b32.xlu0 %v596, 18
        %v604 = vpop.permute.xlu0 %603
        %605 = vrot.lane.b32.xlu0 %v597, 18
        %v606 = vpop.permute.xlu0 %605
        %607 = vrot.lane.b32.xlu0 %v598, 18
        %v608 = vpop.permute.xlu0 %607
        %vm609 = vcmask 146432
        %v610 = vsel %vm609, %v600, %v602
        %v611 = vsel %vm609, %v602, %v604
        %v612 = vsel %vm609, %v604, %v606
        %v613 = vsel %vm609, %v606, %v608
        %618 = vst [vmem:[#allocation2 + $0xc0] sm:$0xf] %v610
        %619 = vst [vmem:[#allocation2 + $0xc8] sm:$0xf] %v611
        %620 = vst [vmem:[#allocation2 + $0xd0] sm:$0xf] %v612
        %621 = vst [vmem:[#allocation2 + $0xd8] sm:$0xf] %v613
        %s622 = scalar_lea.vmem [#allocation1], 1
        %623 = vst [vmem:[%s622] ss:$2 sm:$0xff] %v199
        %s624 = scalar_lea.vmem [#allocation1], 17
        %625 = vst [vmem:[%s624] ss:$2 sm:$0xff] %v200
        %s626 = scalar_lea.vmem [#allocation1], 33
        %627 = vst [vmem:[%s626] ss:$2 sm:$0xff] %v201
        %v628 = vld.sshfl [vmem:[#allocation1] sm:$0xff pattern:$0x75316420]
        %v629 = vld.sshfl [vmem:[#allocation1 + $0x8] sm:$0xff pattern:$0x75316420]
        %v630 = vld.sshfl [vmem:[#allocation1 + $0x10] sm:$0xff pattern:$0x75316420]
        %v631 = vld.sshfl [vmem:[#allocation1 + $0x18] sm:$0xff pattern:$0x75316420]
        %v632 = vld.sshfl [vmem:[#allocation1 + $0x20] sm:$0xff pattern:$0x75316420]
        %633 = vrot.lane.b32.xlu0 %v628, 17
        %v634 = vpop.permute.xlu0 %633
        %635 = vrot.lane.b32.xlu0 %v629, 17
        %v636 = vpop.permute.xlu0 %635
        %637 = vrot.lane.b32.xlu0 %v630, 17
        %v638 = vpop.permute.xlu0 %637
        %639 = vrot.lane.b32.xlu0 %v631, 17
        %v640 = vpop.permute.xlu0 %639
        %641 = vrot.lane.b32.xlu0 %v632, 17
        %v642 = vpop.permute.xlu0 %641
        %vm643 = vcmask 138240
        %v644 = vsel %vm643, %v634, %v636
        %v645 = vsel %vm643, %v636, %v638
        %v646 = vsel %vm643, %v638, %v640
        %v647 = vsel %vm643, %v640, %v642
        %652 = vst [vmem:[#allocation2 + $0xc0] sm:$0xf0] %v644
        %653 = vst [vmem:[#allocation2 + $0xc8] sm:$0xf0] %v645
        %654 = vst [vmem:[#allocation2 + $0xd0] sm:$0xf0] %v646
        %655 = vst [vmem:[#allocation2 + $0xd8] sm:$0xf0] %v647
        %656 = vst [vmem:[#allocation1] ss:$2 sm:$0xff] %v199
        %s657 = scalar_lea.vmem [#allocation1], 16
        %658 = vst [vmem:[%s657] ss:$2 sm:$0xff] %v200
        %s659 = scalar_lea.vmem [#allocation1], 32
        %660 = vst [vmem:[%s659] ss:$2 sm:$0xff] %v201
        %v661 = vld.sshfl [vmem:[#allocation1] sm:$0xff pattern:$0x75316420]
        %v662 = vld.sshfl [vmem:[#allocation1 + $0x8] sm:$0xff pattern:$0x75316420]
        %v663 = vld.sshfl [vmem:[#allocation1 + $0x10] sm:$0xff pattern:$0x75316420]
        %v664 = vld.sshfl [vmem:[#allocation1 + $0x18] sm:$0xff pattern:$0x75316420]
        %v665 = vld.sshfl [vmem:[#allocation1 + $0x20] sm:$0xff pattern:$0x75316420]
        %666 = vrot.lane.b32.xlu0 %v661, 16
        %v667 = vpop.permute.xlu0 %666
        %668 = vrot.lane.b32.xlu0 %v662, 16
        %v669 = vpop.permute.xlu0 %668
        %670 = vrot.lane.b32.xlu0 %v663, 16
        %v671 = vpop.permute.xlu0 %670
        %672 = vrot.lane.b32.xlu0 %v664, 16
        %v673 = vpop.permute.xlu0 %672
        %674 = vrot.lane.b32.xlu0 %v665, 16
        %v675 = vpop.permute.xlu0 %674
        %vm676 = vcmask 130048
        %v677 = vsel %vm676, %v667, %v669
        %v678 = vsel %vm676, %v669, %v671
        %v679 = vsel %vm676, %v671, %v673
        %v680 = vsel %vm676, %v673, %v675
        %685 = vst [vmem:[#allocation2 + $0xe0] sm:$0xf] %v677
        %686 = vst [vmem:[#allocation2 + $0xe8] sm:$0xf] %v678
        %687 = vst [vmem:[#allocation2 + $0xf0] sm:$0xf] %v679
        %688 = vst [vmem:[#allocation2 + $0xf8] sm:$0xf] %v680
        %s689 = scalar_lea.vmem [#allocation1], 1
        %690 = vst [vmem:[%s689] ss:$2 sm:$0xff] %v199
        %s691 = scalar_lea.vmem [#allocation1], 17
        %692 = vst [vmem:[%s691] ss:$2 sm:$0xff] %v200
        %s693 = scalar_lea.vmem [#allocation1], 33
        %694 = vst [vmem:[%s693] ss:$2 sm:$0xff] %v201
        %v695 = vld.sshfl [vmem:[#allocation1] sm:$0xff pattern:$0x75316420]
        %v696 = vld.sshfl [vmem:[#allocation1 + $0x8] sm:$0xff pattern:$0x75316420]
        %v697 = vld.sshfl [vmem:[#allocation1 + $0x10] sm:$0xff pattern:$0x75316420]
        %v698 = vld.sshfl [vmem:[#allocation1 + $0x18] sm:$0xff pattern:$0x75316420]
        %v699 = vld.sshfl [vmem:[#allocation1 + $0x20] sm:$0xff pattern:$0x75316420]
        %700 = vrot.lane.b32.xlu0 %v695, 8
        %v701 = vpop.permute.xlu0 %700
        %702 = vrot.lane.b32.xlu0 %v696, 8
        %v703 = vpop.permute.xlu0 %702
        %704 = vrot.lane.b32.xlu0 %v697, 8
        %v705 = vpop.permute.xlu0 %704
        %706 = vrot.lane.b32.xlu0 %v698, 8
        %v707 = vpop.permute.xlu0 %706
        %708 = vrot.lane.b32.xlu0 %v699, 8
        %v709 = vpop.permute.xlu0 %708
        %vm710 = vcmask 64512
        %v711 = vsel %vm710, %v701, %v703
        %v712 = vsel %vm710, %v703, %v705
        %v713 = vsel %vm710, %v705, %v707
        %v714 = vsel %vm710, %v707, %v709
        %719 = vst [vmem:[#allocation2 + $0xe0] sm:$0xf0] %v711
        %720 = vst [vmem:[#allocation2 + $0xe8] sm:$0xf0] %v712
        %721 = vst [vmem:[#allocation2 + $0xf0] sm:$0xf0] %v713
        %722 = vst [vmem:[#allocation2 + $0xf8] sm:$0xf0] %v714
        %723 = vst [vmem:[#allocation1] ss:$2 sm:$0xff] %v199
        %s724 = scalar_lea.vmem [#allocation1], 16
        %725 = vst [vmem:[%s724] ss:$2 sm:$0xff] %v200
        %s726 = scalar_lea.vmem [#allocation1], 32
        %727 = vst [vmem:[%s726] ss:$2 sm:$0xff] %v201
        %v728 = vld.sshfl [vmem:[#allocation1] sm:$0xff pattern:$0x75316420]
        %v729 = vld.sshfl [vmem:[#allocation1 + $0x8] sm:$0xff pattern:$0x75316420]
        %v730 = vld.sshfl [vmem:[#allocation1 + $0x10] sm:$0xff pattern:$0x75316420]
        %v731 = vld.sshfl [vmem:[#allocation1 + $0x18] sm:$0xff pattern:$0x75316420]
        %v732 = vld.sshfl [vmem:[#allocation1 + $0x20] sm:$0xff pattern:$0x75316420]
        %733 = vrot.lane.b32.xlu0 %v728, 7
        %v734 = vpop.permute.xlu0 %733
        %735 = vrot.lane.b32.xlu0 %v729, 7
        %v736 = vpop.permute.xlu0 %735
        %737 = vrot.lane.b32.xlu0 %v730, 7
        %v738 = vpop.permute.xlu0 %737
        %739 = vrot.lane.b32.xlu0 %v731, 7
        %v740 = vpop.permute.xlu0 %739
        %741 = vrot.lane.b32.xlu0 %v732, 7
        %v742 = vpop.permute.xlu0 %741
        %vm743 = vcmask 56320
        %v744 = vsel %vm743, %v734, %v736
        %v745 = vsel %vm743, %v736, %v738
        %v746 = vsel %vm743, %v738, %v740
        %v747 = vsel %vm743, %v740, %v742
        %752 = vst [vmem:[#allocation2 + $0x100] sm:$0xf] %v744
        %753 = vst [vmem:[#allocation2 + $0x108] sm:$0xf] %v745
        %754 = vst [vmem:[#allocation2 + $0x110] sm:$0xf] %v746
        %755 = vst [vmem:[#allocation2 + $0x118] sm:$0xf] %v747
        %s756 = scalar_lea.vmem [#allocation1], 1
        %757 = vst [vmem:[%s756] ss:$2 sm:$0xff] %v199
        %s758 = scalar_lea.vmem [#allocation1], 17
        %759 = vst [vmem:[%s758] ss:$2 sm:$0xff] %v200
        %s760 = scalar_lea.vmem [#allocation1], 33
        %761 = vst [vmem:[%s760] ss:$2 sm:$0xff] %v201
        %v762 = vld.sshfl [vmem:[#allocation1] sm:$0xff pattern:$0x75316420]
        %v763 = vld.sshfl [vmem:[#allocation1 + $0x8] sm:$0xff pattern:$0x75316420]
        %v764 = vld.sshfl [vmem:[#allocation1 + $0x10] sm:$0xff pattern:$0x75316420]
        %v765 = vld.sshfl [vmem:[#allocation1 + $0x18] sm:$0xff pattern:$0x75316420]
        %v766 = vld.sshfl [vmem:[#allocation1 + $0x20] sm:$0xff pattern:$0x75316420]
        %767 = vrot.lane.b32.xlu0 %v762, 6
        %v768 = vpop.permute.xlu0 %767
        %769 = vrot.lane.b32.xlu0 %v763, 6
        %v770 = vpop.permute.xlu0 %769
        %771 = vrot.lane.b32.xlu0 %v764, 6
        %v772 = vpop.permute.xlu0 %771
        %773 = vrot.lane.b32.xlu0 %v765, 6
        %v774 = vpop.permute.xlu0 %773
        %775 = vrot.lane.b32.xlu0 %v766, 6
        %v776 = vpop.permute.xlu0 %775
        %vm777 = vcmask 48128
        %v778 = vsel %vm777, %v768, %v770
        %v779 = vsel %vm777, %v770, %v772
        %v780 = vsel %vm777, %v772, %v774
        %v781 = vsel %vm777, %v774, %v776
        %786 = vst [vmem:[#allocation2 + $0x100] sm:$0xf0] %v778
        %787 = vst [vmem:[#allocation2 + $0x108] sm:$0xf0] %v779
        %788 = vst [vmem:[#allocation2 + $0x110] sm:$0xf0] %v780
        %789 = vst [vmem:[#allocation2 + $0x118] sm:$0xf0] %v781
        %790 = vst [vmem:[#allocation1] ss:$2 sm:$0xff] %v199
        %s791 = scalar_lea.vmem [#allocation1], 16
        %792 = vst [vmem:[%s791] ss:$2 sm:$0xff] %v200
        %s793 = scalar_lea.vmem [#allocation1], 32
        %794 = vst [vmem:[%s793] ss:$2 sm:$0xff] %v201
        %v795 = vld.sshfl [vmem:[#allocation1 + $0x8] sm:$0xff pattern:$0x75316420]
        %v796 = vld.sshfl [vmem:[#allocation1 + $0x10] sm:$0xff pattern:$0x75316420]
        %v797 = vld.sshfl [vmem:[#allocation1 + $0x18] sm:$0xff pattern:$0x75316420]
        %v798 = vld.sshfl [vmem:[#allocation1 + $0x20] sm:$0xff pattern:$0x75316420]
        %v799 = vld.sshfl [vmem:[#allocation1 + $0x28] sm:$0xff pattern:$0x75316420]
        %800 = vrot.lane.b32.xlu0 %v795, 56
        %v801 = vpop.permute.xlu0 %800
        %802 = vrot.lane.b32.xlu0 %v796, 56
        %v803 = vpop.permute.xlu0 %802
        %804 = vrot.lane.b32.xlu0 %v797, 56
        %v805 = vpop.permute.xlu0 %804
        %806 = vrot.lane.b32.xlu0 %v798, 56
        %v807 = vpop.permute.xlu0 %806
        %808 = vrot.lane.b32.xlu0 %v799, 56
        %v809 = vpop.permute.xlu0 %808
        %vm810 = vcmask 457728
        %v811 = vsel %vm810, %v801, %v803
        %v812 = vsel %vm810, %v803, %v805
        %v813 = vsel %vm810, %v805, %v807
        %v814 = vsel %vm810, %v807, %v809
        %819 = vst [vmem:[#allocation2 + $0x120] sm:$0xf] %v811
        %820 = vst [vmem:[#allocation2 + $0x128] sm:$0xf] %v812
        %821 = vst [vmem:[#allocation2 + $0x130] sm:$0xf] %v813
        %822 = vst [vmem:[#allocation2 + $0x138] sm:$0xf] %v814
        %s823 = scalar_lea.vmem [#allocation1], 1
        %824 = vst [vmem:[%s823] ss:$2 sm:$0xff] %v199
        %s825 = scalar_lea.vmem [#allocation1], 17
        %826 = vst [vmem:[%s825] ss:$2 sm:$0xff] %v200
        %s827 = scalar_lea.vmem [#allocation1], 33
        %828 = vst [vmem:[%s827] ss:$2 sm:$0xff] %v201
        %v829 = vld.sshfl [vmem:[#allocation1 + $0x8] sm:$0xff pattern:$0x75316420]
        %v830 = vld.sshfl [vmem:[#allocation1 + $0x10] sm:$0xff pattern:$0x75316420]
        %v831 = vld.sshfl [vmem:[#allocation1 + $0x18] sm:$0xff pattern:$0x75316420]
        %v832 = vld.sshfl [vmem:[#allocation1 + $0x20] sm:$0xff pattern:$0x75316420]
        %v833 = vld.sshfl [vmem:[#allocation1 + $0x28] sm:$0xff pattern:$0x75316420]
        %834 = vrot.lane.b32.xlu0 %v829, 55
        %v835 = vpop.permute.xlu0 %834
        %836 = vrot.lane.b32.xlu0 %v830, 55
        %v837 = vpop.permute.xlu0 %836
        %838 = vrot.lane.b32.xlu0 %v831, 55
        %v839 = vpop.permute.xlu0 %838
        %840 = vrot.lane.b32.xlu0 %v832, 55
        %v841 = vpop.permute.xlu0 %840
        %842 = vrot.lane.b32.xlu0 %v833, 55
        %v843 = vpop.permute.xlu0 %842
        %vm844 = vcmask 449536
        %v845 = vsel %vm844, %v835, %v837
        %v846 = vsel %vm844, %v837, %v839
        %v847 = vsel %vm844, %v839, %v841
        %v848 = vsel %vm844, %v841, %v843
        %853 = vst [vmem:[#allocation2 + $0x120] sm:$0xf0] %v845
        %854 = vst [vmem:[#allocation2 + $0x128] sm:$0xf0] %v846
        %855 = vst [vmem:[#allocation2 + $0x130] sm:$0xf0] %v847
        %856 = vst [vmem:[#allocation2 + $0x138] sm:$0xf0] %v848
        %857 = vst [vmem:[#allocation1] ss:$2 sm:$0xff] %v199
        %s858 = scalar_lea.vmem [#allocation1], 16
        %859 = vst [vmem:[%s858] ss:$2 sm:$0xff] %v200
        %s860 = scalar_lea.vmem [#allocation1], 32
        %861 = vst [vmem:[%s860] ss:$2 sm:$0xff] %v201
        %v862 = vld.sshfl [vmem:[#allocation1 + $0x8] sm:$0xff pattern:$0x75316420]
        %v863 = vld.sshfl [vmem:[#allocation1 + $0x10] sm:$0xff pattern:$0x75316420]
        %v864 = vld.sshfl [vmem:[#allocation1 + $0x18] sm:$0xff pattern:$0x75316420]
        %v865 = vld.sshfl [vmem:[#allocation1 + $0x20] sm:$0xff pattern:$0x75316420]
        %v866 = vld.sshfl [vmem:[#allocation1 + $0x28] sm:$0xff pattern:$0x75316420]
        %867 = vrot.lane.b32.xlu0 %v862, 54
        %v868 = vpop.permute.xlu0 %867
        %869 = vrot.lane.b32.xlu0 %v863, 54
        %v870 = vpop.permute.xlu0 %869
        %871 = vrot.lane.b32.xlu0 %v864, 54
        %v872 = vpop.permute.xlu0 %871
        %873 = vrot.lane.b32.xlu0 %v865, 54
        %v874 = vpop.permute.xlu0 %873
        %875 = vrot.lane.b32.xlu0 %v866, 54
        %v876 = vpop.permute.xlu0 %875
        %vm877 = vcmask 441344
        %v878 = vsel %vm877, %v868, %v870
        %v879 = vsel %vm877, %v870, %v872
        %v880 = vsel %vm877, %v872, %v874
        %v881 = vsel %vm877, %v874, %v876
        %886 = vst [vmem:[#allocation2 + $0x140] sm:$0xf] %v878
        %887 = vst [vmem:[#allocation2 + $0x148] sm:$0xf] %v879
        %888 = vst [vmem:[#allocation2 + $0x150] sm:$0xf] %v880
        %889 = vst [vmem:[#allocation2 + $0x158] sm:$0xf] %v881
        %s890 = scalar_lea.vmem [#allocation1], 1
        %891 = vst [vmem:[%s890] ss:$2 sm:$0xff] %v199
        %s892 = scalar_lea.vmem [#allocation1], 17
        %893 = vst [vmem:[%s892] ss:$2 sm:$0xff] %v200
        %s894 = scalar_lea.vmem [#allocation1], 33
        %895 = vst [vmem:[%s894] ss:$2 sm:$0xff] %v201
        %v896 = vld.sshfl [vmem:[#allocation1 + $0x8] sm:$0xff pattern:$0x75316420]
        %v897 = vld.sshfl [vmem:[#allocation1 + $0x10] sm:$0xff pattern:$0x75316420]
        %v898 = vld.sshfl [vmem:[#allocation1 + $0x18] sm:$0xff pattern:$0x75316420]
        %v899 = vld.sshfl [vmem:[#allocation1 + $0x20] sm:$0xff pattern:$0x75316420]
        %v900 = vld.sshfl [vmem:[#allocation1 + $0x28] sm:$0xff pattern:$0x75316420]
        %901 = vrot.lane.b32.xlu0 %v896, 46
        %v902 = vpop.permute.xlu0 %901
        %903 = vrot.lane.b32.xlu0 %v897, 46
        %v904 = vpop.permute.xlu0 %903
        %905 = vrot.lane.b32.xlu0 %v898, 46
        %v906 = vpop.permute.xlu0 %905
        %907 = vrot.lane.b32.xlu0 %v899, 46
        %v908 = vpop.permute.xlu0 %907
        %909 = vrot.lane.b32.xlu0 %v900, 46
        %v910 = vpop.permute.xlu0 %909
        %vm911 = vcmask 375808
        %v912 = vsel %vm911, %v902, %v904
        %v913 = vsel %vm911, %v904, %v906
        %v914 = vsel %vm911, %v906, %v908
        %v915 = vsel %vm911, %v908, %v910
        %920 = vst [vmem:[#allocation2 + $0x140] sm:$0xf0] %v912
        %921 = vst [vmem:[#allocation2 + $0x148] sm:$0xf0] %v913
        %922 = vst [vmem:[#allocation2 + $0x150] sm:$0xf0] %v914
        %923 = vst [vmem:[#allocation2 + $0x158] sm:$0xf0] %v915
        %924 = vst [vmem:[#allocation1] ss:$2 sm:$0xff] %v199
        %s925 = scalar_lea.vmem [#allocation1], 16
        %926 = vst [vmem:[%s925] ss:$2 sm:$0xff] %v200
        %s927 = scalar_lea.vmem [#allocation1], 32
        %928 = vst [vmem:[%s927] ss:$2 sm:$0xff] %v201
        %v929 = vld.sshfl [vmem:[#allocation1 + $0x8] sm:$0xff pattern:$0x75316420]
        %v930 = vld.sshfl [vmem:[#allocation1 + $0x10] sm:$0xff pattern:$0x75316420]
        %v931 = vld.sshfl [vmem:[#allocation1 + $0x18] sm:$0xff pattern:$0x75316420]
        %v932 = vld.sshfl [vmem:[#allocation1 + $0x20] sm:$0xff pattern:$0x75316420]
        %v933 = vld.sshfl [vmem:[#allocation1 + $0x28] sm:$0xff pattern:$0x75316420]
        %934 = vrot.lane.b32.xlu0 %v929, 45
        %v935 = vpop.permute.xlu0 %934
        %936 = vrot.lane.b32.xlu0 %v930, 45
        %v937 = vpop.permute.xlu0 %936
        %938 = vrot.lane.b32.xlu0 %v931, 45
        %v939 = vpop.permute.xlu0 %938
        %940 = vrot.lane.b32.xlu0 %v932, 45
        %v941 = vpop.permute.xlu0 %940
        %942 = vrot.lane.b32.xlu0 %v933, 45
        %v943 = vpop.permute.xlu0 %942
        %vm944 = vcmask 367616
        %v945 = vsel %vm944, %v935, %v937
        %v946 = vsel %vm944, %v937, %v939
        %v947 = vsel %vm944, %v939, %v941
        %v948 = vsel %vm944, %v941, %v943
        %953 = vst [vmem:[#allocation2 + $0x160] sm:$0xf] %v945
        %954 = vst [vmem:[#allocation2 + $0x168] sm:$0xf] %v946
        %955 = vst [vmem:[#allocation2 + $0x170] sm:$0xf] %v947
        %956 = vst [vmem:[#allocation2 + $0x178] sm:$0xf] %v948
        %s957 = scalar_lea.vmem [#allocation1], 1
        %958 = vst [vmem:[%s957] ss:$2 sm:$0xff] %v199
        %s959 = scalar_lea.vmem [#allocation1], 17
        %960 = vst [vmem:[%s959] ss:$2 sm:$0xff] %v200
        %s961 = scalar_lea.vmem [#allocation1], 33
        %962 = vst [vmem:[%s961] ss:$2 sm:$0xff] %v201
        %v963 = vld.sshfl [vmem:[#allocation1 + $0x8] sm:$0xff pattern:$0x75316420]
        %v964 = vld.sshfl [vmem:[#allocation1 + $0x10] sm:$0xff pattern:$0x75316420]
        %v965 = vld.sshfl [vmem:[#allocation1 + $0x18] sm:$0xff pattern:$0x75316420]
        %v966 = vld.sshfl [vmem:[#allocation1 + $0x20] sm:$0xff pattern:$0x75316420]
        %v967 = vld.sshfl [vmem:[#allocation1 + $0x28] sm:$0xff pattern:$0x75316420]
        %968 = vrot.lane.b32.xlu0 %v963, 44
        %v969 = vpop.permute.xlu0 %968
        %970 = vrot.lane.b32.xlu0 %v964, 44
        %v971 = vpop.permute.xlu0 %970
        %972 = vrot.lane.b32.xlu0 %v965, 44
        %v973 = vpop.permute.xlu0 %972
        %974 = vrot.lane.b32.xlu0 %v966, 44
        %v975 = vpop.permute.xlu0 %974
        %976 = vrot.lane.b32.xlu0 %v967, 44
        %v977 = vpop.permute.xlu0 %976
        %vm978 = vcmask 359424
        %v979 = vsel %vm978, %v969, %v971
        %v980 = vsel %vm978, %v971, %v973
        %v981 = vsel %vm978, %v973, %v975
        %v982 = vsel %vm978, %v975, %v977
        %987 = vst [vmem:[#allocation2 + $0x160] sm:$0xf0] %v979
        %988 = vst [vmem:[#allocation2 + $0x168] sm:$0xf0] %v980
        %989 = vst [vmem:[#allocation2 + $0x170] sm:$0xf0] %v981
        %990 = vst [vmem:[#allocation2 + $0x178] sm:$0xf0] %v982
        %991 = vst [vmem:[#allocation1] ss:$2 sm:$0xff] %v199
        %s992 = scalar_lea.vmem [#allocation1], 16
        %993 = vst [vmem:[%s992] ss:$2 sm:$0xff] %v200
        %s994 = scalar_lea.vmem [#allocation1], 32
        %995 = vst [vmem:[%s994] ss:$2 sm:$0xff] %v201
        %v996 = vld.sshfl [vmem:[#allocation1 + $0x8] sm:$0xff pattern:$0x75316420]
        %v997 = vld.sshfl [vmem:[#allocation1 + $0x10] sm:$0xff pattern:$0x75316420]
        %v998 = vld.sshfl [vmem:[#allocation1 + $0x18] sm:$0xff pattern:$0x75316420]
        %v999 = vld.sshfl [vmem:[#allocation1 + $0x20] sm:$0xff pattern:$0x75316420]
        %v1000 = vld.sshfl [vmem:[#allocation1 + $0x28] sm:$0xff pattern:$0x75316420]
        %1001 = vrot.lane.b32.xlu0 %v996, 36
        %v1002 = vpop.permute.xlu0 %1001
        %1003 = vrot.lane.b32.xlu0 %v997, 36
        %v1004 = vpop.permute.xlu0 %1003
        %1005 = vrot.lane.b32.xlu0 %v998, 36
        %v1006 = vpop.permute.xlu0 %1005
        %1007 = vrot.lane.b32.xlu0 %v999, 36
        %v1008 = vpop.permute.xlu0 %1007
        %1009 = vrot.lane.b32.xlu0 %v1000, 36
        %v1010 = vpop.permute.xlu0 %1009
        %vm1011 = vcmask 293888
        %v1012 = vsel %vm1011, %v1002, %v1004
        %v1013 = vsel %vm1011, %v1004, %v1006
        %v1014 = vsel %vm1011, %v1006, %v1008
        %v1015 = vsel %vm1011, %v1008, %v1010
        %1020 = vst [vmem:[#allocation2 + $0x180] sm:$0xf] %v1012
        %1021 = vst [vmem:[#allocation2 + $0x188] sm:$0xf] %v1013
        %1022 = vst [vmem:[#allocation2 + $0x190] sm:$0xf] %v1014
        %1023 = vst [vmem:[#allocation2 + $0x198] sm:$0xf] %v1015
        %s1024 = scalar_lea.vmem [#allocation1], 1
        %1025 = vst [vmem:[%s1024] ss:$2 sm:$0xff] %v199
        %s1026 = scalar_lea.vmem [#allocation1], 17
        %1027 = vst [vmem:[%s1026] ss:$2 sm:$0xff] %v200
        %s1028 = scalar_lea.vmem [#allocation1], 33
        %1029 = vst [vmem:[%s1028] ss:$2 sm:$0xff] %v201
        %v1030 = vld.sshfl [vmem:[#allocation1 + $0x8] sm:$0xff pattern:$0x75316420]
        %v1031 = vld.sshfl [vmem:[#allocation1 + $0x10] sm:$0xff pattern:$0x75316420]
        %v1032 = vld.sshfl [vmem:[#allocation1 + $0x18] sm:$0xff pattern:$0x75316420]
        %v1033 = vld.sshfl [vmem:[#allocation1 + $0x20] sm:$0xff pattern:$0x75316420]
        %v1034 = vld.sshfl [vmem:[#allocation1 + $0x28] sm:$0xff pattern:$0x75316420]
        %1035 = vrot.lane.b32.xlu0 %v1030, 35
        %v1036 = vpop.permute.xlu0 %1035
        %1037 = vrot.lane.b32.xlu0 %v1031, 35
        %v1038 = vpop.permute.xlu0 %1037
        %1039 = vrot.lane.b32.xlu0 %v1032, 35
        %v1040 = vpop.permute.xlu0 %1039
        %1041 = vrot.lane.b32.xlu0 %v1033, 35
        %v1042 = vpop.permute.xlu0 %1041
        %1043 = vrot.lane.b32.xlu0 %v1034, 35
        %v1044 = vpop.permute.xlu0 %1043
        %vm1045 = vcmask 285696
        %v1046 = vsel %vm1045, %v1036, %v1038
        %v1047 = vsel %vm1045, %v1038, %v1040
        %v1048 = vsel %vm1045, %v1040, %v1042
        %v1049 = vsel %vm1045, %v1042, %v1044
        %1054 = vst [vmem:[#allocation2 + $0x180] sm:$0xf0] %v1046
        %1055 = vst [vmem:[#allocation2 + $0x188] sm:$0xf0] %v1047
        %1056 = vst [vmem:[#allocation2 + $0x190] sm:$0xf0] %v1048
        %1057 = vst [vmem:[#allocation2 + $0x198] sm:$0xf0] %v1049
        %1058 = vst [vmem:[#allocation1] ss:$2 sm:$0xff] %v199
        %s1059 = scalar_lea.vmem [#allocation1], 16
        %1060 = vst [vmem:[%s1059] ss:$2 sm:$0xff] %v200
        %s1061 = scalar_lea.vmem [#allocation1], 32
        %1062 = vst [vmem:[%s1061] ss:$2 sm:$0xff] %v201
        %v1063 = vld.sshfl [vmem:[#allocation1 + $0x8] sm:$0xff pattern:$0x75316420]
        %v1064 = vld.sshfl [vmem:[#allocation1 + $0x10] sm:$0xff pattern:$0x75316420]
        %v1065 = vld.sshfl [vmem:[#allocation1 + $0x18] sm:$0xff pattern:$0x75316420]
        %v1066 = vld.sshfl [vmem:[#allocation1 + $0x20] sm:$0xff pattern:$0x75316420]
        %v1067 = vld.sshfl [vmem:[#allocation1 + $0x28] sm:$0xff pattern:$0x75316420]
        %1068 = vrot.lane.b32.xlu0 %v1063, 34
        %v1069 = vpop.permute.xlu0 %1068
        %1070 = vrot.lane.b32.xlu0 %v1064, 34
        %v1071 = vpop.permute.xlu0 %1070
        %1072 = vrot.lane.b32.xlu0 %v1065, 34
        %v1073 = vpop.permute.xlu0 %1072
        %1074 = vrot.lane.b32.xlu0 %v1066, 34
        %v1075 = vpop.permute.xlu0 %1074
        %1076 = vrot.lane.b32.xlu0 %v1067, 34
        %v1077 = vpop.permute.xlu0 %1076
        %vm1078 = vcmask 277504
        %v1079 = vsel %vm1078, %v1069, %v1071
        %v1080 = vsel %vm1078, %v1071, %v1073
        %v1081 = vsel %vm1078, %v1073, %v1075
        %v1082 = vsel %vm1078, %v1075, %v1077
        %1087 = vst [vmem:[#allocation2 + $0x1a0] sm:$0xf] %v1079
        %1088 = vst [vmem:[#allocation2 + $0x1a8] sm:$0xf] %v1080
        %1089 = vst [vmem:[#allocation2 + $0x1b0] sm:$0xf] %v1081
        %1090 = vst [vmem:[#allocation2 + $0x1b8] sm:$0xf] %v1082
        %v1091 = vld [vmem:[#allocation6] sm:$0xff]
        %v1092 = vld [vmem:[#allocation2] sm:$0xff]
        %v1093 = vld [vmem:[#allocation2 + $0x8] sm:$0xff]
        %v1094 = vld [vmem:[#allocation2 + $0x10] sm:$0xff]
        %v1095 = vld [vmem:[#allocation2 + $0x18] sm:$0xff]
        %v1096 = vld [vmem:[#allocation2 + $0x20] sm:$0xff]
        %v1097 = vld [vmem:[#allocation2 + $0x28] sm:$0xff]
        %v1098 = vld [vmem:[#allocation2 + $0x30] sm:$0xff]
        %v1099 = vld [vmem:[#allocation2 + $0x38] sm:$0xff]
        %v1100 = vld [vmem:[#allocation2 + $0x40] sm:$0xff]
        %v1101 = vld [vmem:[#allocation2 + $0x48] sm:$0xff]
        %v1102 = vld [vmem:[#allocation2 + $0x50] sm:$0xff]
        %v1103 = vld [vmem:[#allocation2 + $0x58] sm:$0xff]
        %v1104 = vld [vmem:[#allocation2 + $0x60] sm:$0xff]
        %v1105 = vld [vmem:[#allocation2 + $0x68] sm:$0xff]
        %v1106 = vld [vmem:[#allocation2 + $0x70] sm:$0xff]
        %v1107 = vld [vmem:[#allocation2 + $0x78] sm:$0xff]
        %v1108 = vld [vmem:[#allocation2 + $0x80] sm:$0xff]
        %v1109 = vld [vmem:[#allocation2 + $0x88] sm:$0xff]
        %v1110 = vld [vmem:[#allocation2 + $0x90] sm:$0xff]
        %v1111 = vld [vmem:[#allocation2 + $0x98] sm:$0xff]
        %v1112 = vld [vmem:[#allocation2 + $0xa0] sm:$0xff]
        %v1113 = vld [vmem:[#allocation2 + $0xa8] sm:$0xff]
        %v1114 = vld [vmem:[#allocation2 + $0xb0] sm:$0xff]
        %v1115 = vld [vmem:[#allocation2 + $0xb8] sm:$0xff]
        %v1116 = vld [vmem:[#allocation2 + $0xc0] sm:$0xff]
        %v1117 = vld [vmem:[#allocation2 + $0xc8] sm:$0xff]
        %v1118 = vld [vmem:[#allocation2 + $0xd0] sm:$0xff]
        %v1119 = vld [vmem:[#allocation2 + $0xd8] sm:$0xff]
        %v1120 = vld [vmem:[#allocation2 + $0xe0] sm:$0xff]
        %v1121 = vld [vmem:[#allocation2 + $0xe8] sm:$0xff]
        %v1122 = vld [vmem:[#allocation2 + $0xf0] sm:$0xff]
        %v1123 = vld [vmem:[#allocation2 + $0xf8] sm:$0xff]
        %v1124 = vld [vmem:[#allocation2 + $0x100] sm:$0xff]
        %v1125 = vld [vmem:[#allocation2 + $0x108] sm:$0xff]
        %v1126 = vld [vmem:[#allocation2 + $0x110] sm:$0xff]
        %v1127 = vld [vmem:[#allocation2 + $0x118] sm:$0xff]
        %v1128 = vld [vmem:[#allocation2 + $0x120] sm:$0xff]
        %v1129 = vld [vmem:[#allocation2 + $0x128] sm:$0xff]
        %v1130 = vld [vmem:[#allocation2 + $0x130] sm:$0xff]
        %v1131 = vld [vmem:[#allocation2 + $0x138] sm:$0xff]
        %v1132 = vld [vmem:[#allocation2 + $0x140] sm:$0xff]
        %v1133 = vld [vmem:[#allocation2 + $0x148] sm:$0xff]
        %v1134 = vld [vmem:[#allocation2 + $0x150] sm:$0xff]
        %v1135 = vld [vmem:[#allocation2 + $0x158] sm:$0xff]
        %v1136 = vld [vmem:[#allocation2 + $0x160] sm:$0xff]
        %v1137 = vld [vmem:[#allocation2 + $0x168] sm:$0xff]
        %v1138 = vld [vmem:[#allocation2 + $0x170] sm:$0xff]
        %v1139 = vld [vmem:[#allocation2 + $0x178] sm:$0xff]
        %v1140 = vld [vmem:[#allocation2 + $0x180] sm:$0xff]
        %v1141 = vld [vmem:[#allocation2 + $0x188] sm:$0xff]
        %v1142 = vld [vmem:[#allocation2 + $0x190] sm:$0xff]
        %v1143 = vld [vmem:[#allocation2 + $0x198] sm:$0xff]
        %v1144 = vld [vmem:[#allocation2 + $0x1a0] sm:$0xf]
        %v1145 = vld [vmem:[#allocation2 + $0x1a8] sm:$0xf]
        %v1146 = vld [vmem:[#allocation2 + $0x1b0] sm:$0xf]
        %v1147 = vld [vmem:[#allocation2 + $0x1b8] sm:$0xf]
        %v1149 = vsel %vm408, %v1091, 0
        %vm1151 = vcmask 1043456
        %v1153 = vsel %vm1151, %v1144, 0
        %v1156 = vsel %vm1151, %v1145, 0
        %v1159 = vsel %vm1151, %v1146, 0
        %v1162 = vsel %vm1151, %v1147, 0
        %1164 = vmatpush.msra.mxu0 0.0
        %1165 = vmatpush.msra.mxu0 0.0
        %1166 = vmatpush.msra.mxu0 %v1153
        %1167 = vmatpush.msra.mxu0 %v1140
        %1168 = vmatpush.msra.mxu0 %v1136
        %1169 = vmatpush.msra.mxu0 %v1132
        %1170 = vmatpush.msra.mxu0 %v1128
        %1171 = vmatpush.msra.mxu0 %v1124
        %1172 = vmatpush.msra.mxu0 %v1120
        %1173 = vmatpush.msra.mxu0 %v1116
        %1174 = vmatpush.msra.mxu0 %v1112
        %1175 = vmatpush.msra.mxu0 %v1108
        %1176 = vmatpush.msra.mxu0 %v1104
        %1177 = vmatpush.msra.mxu0 %v1100
        %1178 = vmatpush.msra.mxu0 %v1096
        %1179 = vmatpush.msra.mxu0 %v1092
        %1180 = vmatmul.f32.gmra.mxu0 %v1149
        %v1181 = vpop.f32.mrf.mxu0
        %v1182 = vadd.f32 0.0, %v1181
        %1183 = vdwg.mxu0
        %1184 = vmatpush.msra.mxu0 0.0
        %1185 = vmatpush.msra.mxu0 0.0
        %1186 = vmatpush.msra.mxu0 %v1156
        %1187 = vmatpush.msra.mxu0 %v1141
        %1188 = vmatpush.msra.mxu0 %v1137
        %1189 = vmatpush.msra.mxu0 %v1133
        %1190 = vmatpush.msra.mxu0 %v1129
        %1191 = vmatpush.msra.mxu0 %v1125
        %1192 = vmatpush.msra.mxu0 %v1121
        %1193 = vmatpush.msra.mxu0 %v1117
        %1194 = vmatpush.msra.mxu0 %v1113
        %1195 = vmatpush.msra.mxu0 %v1109
        %1196 = vmatpush.msra.mxu0 %v1105
        %1197 = vmatpush.msra.mxu0 %v1101
        %1198 = vmatpush.msra.mxu0 %v1097
        %1199 = vmatpush.msra.mxu0 %v1093
        %1200 = vmatmul.f32.gmra.mxu0 %v1149
        %v1201 = vpop.f32.mrf.mxu0
        %v1202 = vadd.f32 0.0, %v1201
        %1203 = vdwg.mxu0
        %1204 = vmatpush.msra.mxu0 0.0
        %1205 = vmatpush.msra.mxu0 0.0
        %1206 = vmatpush.msra.mxu0 %v1159
        %1207 = vmatpush.msra.mxu0 %v1142
        %1208 = vmatpush.msra.mxu0 %v1138
        %1209 = vmatpush.msra.mxu0 %v1134
        %1210 = vmatpush.msra.mxu0 %v1130
        %1211 = vmatpush.msra.mxu0 %v1126
        %1212 = vmatpush.msra.mxu0 %v1122
        %1213 = vmatpush.msra.mxu0 %v1118
        %1214 = vmatpush.msra.mxu0 %v1114
        %1215 = vmatpush.msra.mxu0 %v1110
        %1216 = vmatpush.msra.mxu0 %v1106
        %1217 = vmatpush.msra.mxu0 %v1102
        %1218 = vmatpush.msra.mxu0 %v1098
        %1219 = vmatpush.msra.mxu0 %v1094
        %1220 = vmatmul.f32.gmra.mxu0 %v1149
        %v1221 = vpop.f32.mrf.mxu0
        %v1222 = vadd.f32 0.0, %v1221
        %1223 = vdwg.mxu0
        %1224 = vmatpush.msra.mxu0 0.0
        %1225 = vmatpush.msra.mxu0 0.0
        %1226 = vmatpush.msra.mxu0 %v1162
        %1227 = vmatpush.msra.mxu0 %v1143
        %1228 = vmatpush.msra.mxu0 %v1139
        %1229 = vmatpush.msra.mxu0 %v1135
        %1230 = vmatpush.msra.mxu0 %v1131
        %1231 = vmatpush.msra.mxu0 %v1127
        %1232 = vmatpush.msra.mxu0 %v1123
        %1233 = vmatpush.msra.mxu0 %v1119
        %1234 = vmatpush.msra.mxu0 %v1115
        %1235 = vmatpush.msra.mxu0 %v1111
        %1236 = vmatpush.msra.mxu0 %v1107
        %1237 = vmatpush.msra.mxu0 %v1103
        %1238 = vmatpush.msra.mxu0 %v1099
        %1239 = vmatpush.msra.mxu0 %v1095
        %1240 = vmatmul.f32.gmra.mxu0 %v1149
        %v1241 = vpop.f32.mrf.mxu0
        %v1242 = vadd.f32 0.0, %v1241
        %1243 = vdwg.mxu0
        %vm1244 = vcmp.gt.f32.partialorder %v1182, 0.0
        %vm1245 = vcmp.gt.f32.partialorder %v1202, 0.0
        %vm1246 = vcmp.gt.f32.partialorder %v1222, 0.0
        %vm1247 = vcmp.gt.f32.partialorder %v1242, 0.0
        %v1248 = vmul.f32 %v1182, 0.01
        %v1249 = vmul.f32 %v1202, 0.01
        %v1250 = vmul.f32 %v1222, 0.01
        %v1251 = vmul.f32 %v1242, 0.01
        %v1252 = vsel %vm1244, %v1182, %v1248
        %v1253 = vsel %vm1245, %v1202, %v1249
        %v1254 = vsel %vm1246, %v1222, %v1250
        %v1255 = vsel %vm1247, %v1242, %v1251
        %1256 = vst [vmem:[%s190] sm:$0xff] %v1252
        %1257 = vst [vmem:[%s190 + $0x8] sm:$0xff] %v1253
        %1258 = vst [vmem:[%s190 + $0x10] sm:$0xff] %v1254
        %1259 = vst [vmem:[%s190 + $0x18] sm:$0xff] %v1255
        %s1260 = sand.u32 %s89, 1
        %s1261 = scalar_lea.sflag [#allocation5], %s1260
        %s1262 = sand.u32 %s89, 1
        %s1263 = smul.addr %s1262, 32
        %s1264 = scalar_lea.vmem [#allocation8], %s1263
        // Predicated region
        $region37: #{tpu_custom_call.1} parent=27 // pred_check
          %p1265 = pneg %p99
        $region38: #{tpu_custom_call.1} parent=27 // pred_check_branch
          %1267 = sbr.rel (%p1265) target = $region40
        $region39: #{tpu_custom_call.1} parent=27 // pred_region
          %s1268 = smul.u32 4, %s25
          %1270 = vsyncadd %s1261, 0
          %s1271 = smul.addr %s24, 4
          %s1272 = sadd.s32 %s1268, %s1271
          %s1273 = smul.addr %s1272, 8
          %s1274 = scalar_lea.hbm %s2, %s1273
          %s1276 = sshll.u32 %s1264, 4
          %s1277 = int_to_ptr.vmem [resolvable:$true] %s1276
          %s1278 = sshll.u32 %s1274, 4
          %s1279 = int_to_ptr.hbm [resolvable:$true] %s1278
          %1281 = dma.vmem_to_hbm [thread:$0]  %s1277, 512, %s1279, %s1261
        $region40: #{tpu_custom_call.1} parent=27 // pred_fallthru
          _
      $region28: #{tpu_custom_call.1} parent=5 // pred_fallthru
        _
      %p1282 = scmp.le.s32.totalorder 2, %s15
      // Predicated region
      $region41: #{tpu_custom_call.1} parent=5 // pred_check
        %p1283 = pneg %p1282
      $region42: #{tpu_custom_call.1} parent=5 // pred_check_branch
        %1285 = sbr.rel (%p1283) target = $region44
      $region43: #{tpu_custom_call.1} parent=5 // pred_region
        %s1286 = ssub.s32 %s15, 2
        // Predicated region
        $region45: #{tpu_custom_call.1} parent=43 // pred_check
          %p1287 = pneg %p105
        $region46: #{tpu_custom_call.1} parent=43 // pred_check_branch
          %1289 = sbr.rel (%p1287) target = $region48
        $region47: #{tpu_custom_call.1} parent=43 // pred_region
          %s1290 = sand.u32 %s90, 1
          %s1291 = scalar_lea.sflag [#allocation5], %s1290
          %s1292 = sand.u32 %s90, 1
          %s1293 = smul.addr %s1292, 32
          %s1294 = scalar_lea.vmem [#allocation8], %s1293
          %1296 = dma.done %s1291, 512
        $region48: #{tpu_custom_call.1} parent=43 // pred_fallthru
          _
      $region44: #{tpu_custom_call.1} parent=5 // pred_fallthru
        _
    $region6: #{tpu_custom_call.1} parent=1 // loop_footer
      %s19 = sadd.s32 1, %s15
    $region7: #{tpu_custom_call.1} parent=1 // loop_footer_branch
      %14 = sbr.rel target = $region3
    $region8: #{tpu_custom_call.1} parent=1 // loop_exit
      _
    %1297 = vsyncpa [#allocation4], 1
    %s1298 = scalar_lea.sflag [#allocation4], 1
    %1299 = vsyncpa %s1298, 1
    %1300 = vsyncpa [#allocation7], 1
    %1301 = vsyncpa [#allocation5], 1
    %s1302 = scalar_lea.sflag [#allocation5], 1
    %1303 = vsyncpa %s1302, 1

</llo_original>
